<compile_context>
chip_gen: v7x
topology: tpu7x:2x2x1
jax: 0.10.0
libtpu: 0.0.40
codegen_flags: <defaults>
</compile_context>

<pallas_src>
import functools

import jax
import jax.numpy as jnp
from jax.experimental import pallas as pl
from jax.experimental.pallas import tpu as pltpu


def actor_kernel(task_ref, worker_ref, mask_ref, slab_ref, mean_ref, std_ref,
                 *, TB, T, W, D):
    """Fused Actor forward for one batch block of TB rows.

    task_ref   : (TB*T, D)  f32  task embeddings (batch-major rows)
    worker_ref : (TB*W, D)  f32  worker embeddings (batch-major rows)
    mask_ref   : (TB, T)    f32  valid mask (raw, not tiled)
    slab_ref   : (D+3, C)   f32  parameter slab, C = max(2D, W*T):
                   rows 0:D , cols 0:2D  = [task_w^T @ w1a | worker_w^T @ w1b]
                   row  D   , cols 0:2D  = [task bias (incl fus1_b) | worker bias]
                   row  D+1 , cols 0:D   = fus2_w ; col D = fus2_b
                   row  D+2 , cols 0:W*T = exp(log_std) flattened as w*T + t
    mean_ref   : (TB, W*T)  f32  masked mean, lane-dense
    std_ref    : (TB, W*T)  f32  masked std,  lane-dense
    """
    sl = slab_ref[...]

    # --- One MXU issue replaces task_fc, worker_fc and fusion layer 1 ---------
    # Weights were pre-folded in prepare_actor_params; the off-diagonal
    # quadrants of the merged matmul are discarded (free at these sizes).
    stacked = jnp.concatenate([task_ref[...], worker_ref[...]], axis=0)   # (TB*(T+W), D)
    out = jnp.dot(stacked, sl[0:D, 0:2 * D],
                  precision=jax.lax.Precision.HIGHEST,
                  preferred_element_type=jnp.float32)                      # (TB*(T+W), 2D)

    nt = TB * T
    ta = out[0:nt, 0:D] + sl[D:D + 1, 0:D]            # (TB*T, D) task branch
    wb = out[nt:, D:2 * D] + sl[D:D + 1, D:2 * D]     # (TB*W, D) worker branch

    # --- ReLU over the (worker, task) outer product ---------------------------
    # Reshapes below are free re-tilings (T and W are multiples of 8); the batch
    # grid bounds h's live range to TB*W*T*D*4 bytes per step.
    ta3 = ta.reshape(TB, T, D)
    wb3 = wb.reshape(TB, W, D)
    h = jnp.maximum(ta3[:, None, :, :] + wb3[:, :, None, :], 0.0)         # (TB, W, T, D)
    h2 = h.reshape(TB, W * T, D)

    # --- Fusion layer 2: VPU multiply + lane reduce ----------------------------
    # (An output-width-1 MXU matmul would waste the MXU.)
    w2 = sl[D + 1:D + 2, 0:D]                          # (1, D)
    b2 = sl[D + 1:D + 2, D:D + 1]                      # (1, 1)
    mean = jnp.sum(h2 * w2[None, :, :], axis=-1) + b2                     # (TB, W*T)

    # --- Mask: tile the raw (TB, T) mask over workers in-kernel ----------------
    # Lane concat keeps the (TB, 128) outputs full-width; reused for both heads.
    mask_wt = jnp.concatenate([mask_ref[...]] * W, axis=-1)               # (TB, W*T)
    mean_ref[...] = mean * mask_wt
    std_ref[...] = sl[D + 2:D + 3, 0:W * T] * mask_wt                     # (TB, W*T)


def make_actor_params(key, hidden_dim, n_worker, num_pad_tasks):
    """Raw parameters, mirroring the PyTorch module's Linear layers."""
    D = hidden_dim
    ks = jax.random.split(key, 8)

    def lin(k, fan_in, shape):
        bound = 1.0 / jnp.sqrt(jnp.float32(fan_in))
        return jax.random.uniform(k, shape, jnp.float32, -bound, bound)

    return dict(
        task_w=lin(ks[0], D, (D, D)),        # torch Linear weight: (out, in)
        task_b=lin(ks[1], D, (D,)),
        worker_w=lin(ks[2], D, (D, D)),
        worker_b=lin(ks[3], D, (D,)),
        fus1_w=lin(ks[4], 2 * D, (D, 2 * D)),
        fus1_b=lin(ks[5], 2 * D, (D,)),
        fus2_w=lin(ks[6], D, (1, D)),
        fus2_b=lin(ks[7], D, (1,)),
        log_std=jnp.zeros((1, n_worker, num_pad_tasks), jnp.float32),
    )


def prepare_actor_params(params, n_worker, num_pad_tasks):
    """Parameter-only preprocessing. Run ONCE per policy update, NOT per call.

    Folds task_fc / worker_fc into fusion layer 1 (exact algebra) and packs all
    small operands into a single VMEM slab so the kernel needs one parameter DMA.
    """
    D = params["task_w"].shape[0]
    W, T = n_worker, num_pad_tasks
    hp = jax.lax.Precision.HIGHEST

    #   ta = t_proj @ w1a = t @ (task_w^T @ w1a)   + (task_b @ w1a + fus1_b)
    #   wb = w_proj @ w1b = w @ (worker_w^T @ w1b) + (worker_b @ w1b)
    w1a = params["fus1_w"][:, :D].T
    w1b = params["fus1_w"][:, D:].T
    wt_fused = jnp.dot(params["task_w"].T, w1a, precision=hp)        # (D, D)
    ww_fused = jnp.dot(params["worker_w"].T, w1b, precision=hp)      # (D, D)
    bias_t = jnp.dot(params["task_b"], w1a, precision=hp) + params["fus1_b"]
    bias_w = jnp.dot(params["worker_b"], w1b, precision=hp)

    cols = max(2 * D, W * T)
    slab = jnp.zeros((D + 3, cols), jnp.float32)
    slab = slab.at[0:D, 0:D].set(wt_fused)
    slab = slab.at[0:D, D:2 * D].set(ww_fused)
    slab = slab.at[D, 0:D].set(bias_t)
    slab = slab.at[D, D:2 * D].set(bias_w)
    slab = slab.at[D + 1, 0:D].set(params["fus2_w"][0])
    slab = slab.at[D + 1, D].set(params["fus2_b"][0])
    slab = slab.at[D + 2, 0:W * T].set(jnp.exp(params["log_std"]).reshape(W * T))
    return slab


@jax.jit
def actor_forward(slab, task_embed, worker_embed, valid_mask=None):
    """Per-call path: free reshapes + one pallas_call."""
    B, T, D = task_embed.shape
    W = worker_embed.shape[1]
    if valid_mask is None:
        valid_mask = jnp.ones((B, T), jnp.float32)

    task_flat = task_embed.reshape(B * T, D)        # contiguous reshape: free
    worker_flat = worker_embed.reshape(B * W, D)    # contiguous reshape: free
    mask_f = valid_mask.astype(jnp.float32)

    # Batch-block size: one grid step at small B.  For production batch sizes
    # pick tb so each step carries a few hundred matmul rows while h
    # (tb*W*T*D*4 B) stays well under the scoped VMEM limit (32 MiB on v7x);
    # the 'parallel' axis then spreads steps across both v7x TensorCores.
    tb = B
    grid = (B // tb,)

    kern = functools.partial(actor_kernel, TB=tb, T=T, W=W, D=D)
    mean_flat, std_flat = pl.pallas_call(
        kern,
        grid=grid,
        in_specs=[
            pl.BlockSpec((tb * T, D), lambda i: (i, 0)),     # task rows
            pl.BlockSpec((tb * W, D), lambda i: (i, 0)),     # worker rows
            pl.BlockSpec((tb, T), lambda i: (i, 0)),         # raw mask (B, T)
            pl.BlockSpec(slab.shape, lambda i: (0, 0)),      # parameter slab (resident)
        ],
        out_specs=(
            pl.BlockSpec((tb, W * T), lambda i: (i, 0)),     # mean, lane-dense
            pl.BlockSpec((tb, W * T), lambda i: (i, 0)),     # std,  lane-dense
        ),
        out_shape=(
            jax.ShapeDtypeStruct((B, W * T), jnp.float32),
            jax.ShapeDtypeStruct((B, W * T), jnp.float32),
        ),
        compiler_params=pltpu.CompilerParams(dimension_semantics=("parallel",)),
    )(task_flat, worker_flat, mask_f, slab)

    return mean_flat.reshape(B, W, T), std_flat.reshape(B, W, T)


def actor_forward_ref(params, task_embed, worker_embed, valid_mask):
    """Pure-JAX reference mirroring the PyTorch forward exactly (un-fused)."""
    B, T, D = task_embed.shape
    W = worker_embed.shape[1]
    hp = jax.lax.Precision.HIGHEST
    t_proj = jnp.dot(task_embed, params["task_w"].T, precision=hp) + params["task_b"]
    w_proj = jnp.dot(worker_embed, params["worker_w"].T, precision=hp) + params["worker_b"]
    t_e = jnp.broadcast_to(t_proj[:, None, :, :], (B, W, T, D))
    w_e = jnp.broadcast_to(w_proj[:, :, None, :], (B, W, T, D))
    joint = jnp.concatenate([t_e, w_e], axis=-1)                     # (B, W, T, 2D)
    h = jnp.maximum(jnp.dot(joint, params["fus1_w"].T, precision=hp)
                    + params["fus1_b"], 0.0)
    mean = (jnp.dot(h, params["fus2_w"].T, precision=hp) + params["fus2_b"])[..., 0]
    std = jnp.broadcast_to(jnp.exp(params["log_std"]), mean.shape)
    mask = jnp.broadcast_to(valid_mask[:, None, :], mean.shape).astype(mean.dtype)
    return mean * mask, std * mask


if __name__ == "__main__":
    # B, D, W, T — chosen so W*T = 128 (one full lane of output per batch row).
    B, hidden_dim, n_worker, num_pad_tasks = 2, 32, 8, 16

    key = jax.random.PRNGKey(0)
    kp, kt, kw, km = jax.random.split(key, 4)
    params = make_actor_params(kp, hidden_dim, n_worker, num_pad_tasks)
    # One-time (per policy update) parameter fusion — NOT part of the per-call path.
    slab = prepare_actor_params(params, n_worker, num_pad_tasks)
    slab = jax.block_until_ready(slab)

    task_embed = jax.random.normal(kt, (B, num_pad_tasks, hidden_dim), jnp.float32)
    worker_embed = jax.random.normal(kw, (B, n_worker, hidden_dim), jnp.float32)
    valid_mask = (jax.random.uniform(km, (B, num_pad_tasks)) > 0.3).astype(jnp.float32)

    mean, std = actor_forward(slab, task_embed, worker_embed, valid_mask)
    jax.block_until_ready((mean, std))

    mean_ref, std_ref = actor_forward_ref(params, task_embed, worker_embed, valid_mask)
    assert mean.shape == (B, n_worker, num_pad_tasks)
    assert std.shape == (B, n_worker, num_pad_tasks)
    # In-kernel matmul runs at Precision.HIGHEST, so the residual difference is
    # only the (exact-algebra) weight-folding re-association (~1e-6); the
    # tolerance below is kept conservative.
    assert jnp.allclose(mean, mean_ref, rtol=1e-4, atol=1e-4)
    assert jnp.allclose(std, std_ref, rtol=1e-6, atol=1e-6)
    print("KERNEL_OK")
</pallas_src>

<mosaic_0001>
module attributes {stable_mosaic.version = 11 : i64} {
  func.func @actor_kernel(%arg0: i32, %arg1: memref<32x32xf32, #tpu.memory_space<vmem>>, %arg2: memref<16x32xf32, #tpu.memory_space<vmem>>, %arg3: memref<2x16xf32, #tpu.memory_space<vmem>>, %arg4: memref<35x128xf32, #tpu.memory_space<vmem>>, %arg5: memref<2x128xf32, #tpu.memory_space<vmem>>, %arg6: memref<2x128xf32, #tpu.memory_space<vmem>>) attributes {dimension_semantics = [#tpu.dimension_semantics<parallel>], iteration_bounds = array<i64: 1>, scalar_prefetch = 0 : i64, scratch_operands = 0 : i64, tpu.core_type = #tpu.core_type<tc>, window_params = [{transform_indices = @transform_0, window_bounds = array<i64: 32, 32>}, {transform_indices = @transform_1, window_bounds = array<i64: 16, 32>}, {transform_indices = @transform_2, window_bounds = array<i64: 2, 16>}, {pipeline_mode = #tpu.pipeline_mode<synchronous>, transform_indices = @transform_3, window_bounds = array<i64: 35, 128>}, {transform_indices = @transform_4, window_bounds = array<i64: 2, 128>}, {transform_indices = @transform_5, window_bounds = array<i64: 2, 128>}]} {
    %c0 = arith.constant 0 : index
    %c0_0 = arith.constant 0 : index
    %0 = vector.load %arg4[%c0, %c0_0] : memref<35x128xf32, #tpu.memory_space<vmem>>, vector<35x128xf32>
    %c0_1 = arith.constant 0 : index
    %c0_2 = arith.constant 0 : index
    %1 = vector.load %arg1[%c0_1, %c0_2] : memref<32x32xf32, #tpu.memory_space<vmem>>, vector<32x32xf32>
    %c0_3 = arith.constant 0 : index
    %c0_4 = arith.constant 0 : index
    %2 = vector.load %arg2[%c0_3, %c0_4] : memref<16x32xf32, #tpu.memory_space<vmem>>, vector<16x32xf32>
    %3 = tpu.concatenate %1, %2 in 0 : vector<32x32xf32>, vector<16x32xf32> -> vector<48x32xf32>
    %4 = vector.extract_strided_slice %0 {offsets = [0, 0], sizes = [32, 64], strides = [1, 1]} : vector<35x128xf32> to vector<32x64xf32>
    %cst = arith.constant dense<0.000000e+00> : vector<48x64xf32>
    %5 = tpu.matmul %3, %4, %cst {dimension_numbers = #tpu.dot_dimension_numbers<[1], [0], [0], [1], [0, 0, 1, 1], [], []>, precision = #tpu.contract_precision<fp32>} : vector<48x32xf32>, vector<32x64xf32>, vector<48x64xf32> -> vector<48x64xf32>
    %6 = vector.extract_strided_slice %5 {offsets = [0, 0], sizes = [32, 32], strides = [1, 1]} : vector<48x64xf32> to vector<32x32xf32>
    %7 = vector.extract_strided_slice %0 {offsets = [32, 0], sizes = [1, 32], strides = [1, 1]} : vector<35x128xf32> to vector<1x32xf32>
    %8 = vector.broadcast %7 : vector<1x32xf32> to vector<32x32xf32>
    %9 = arith.addf %6, %8 : vector<32x32xf32>
    %10 = vector.extract_strided_slice %5 {offsets = [32, 32], sizes = [16, 32], strides = [1, 1]} : vector<48x64xf32> to vector<16x32xf32>
    %11 = vector.extract_strided_slice %0 {offsets = [32, 32], sizes = [1, 32], strides = [1, 1]} : vector<35x128xf32> to vector<1x32xf32>
    %12 = vector.broadcast %11 : vector<1x32xf32> to vector<16x32xf32>
    %13 = arith.addf %10, %12 : vector<16x32xf32>
    %14 = vector.shape_cast %9 : vector<32x32xf32> to vector<2x16x32xf32>
    %15 = vector.shape_cast %13 : vector<16x32xf32> to vector<2x8x32xf32>
    %16 = vector.shape_cast %14 : vector<2x16x32xf32> to vector<2x1x16x32xf32>
    %17 = vector.shape_cast %15 : vector<2x8x32xf32> to vector<2x8x1x32xf32>
    %18 = vector.broadcast %16 : vector<2x1x16x32xf32> to vector<2x8x16x32xf32>
    %19 = vector.broadcast %17 : vector<2x8x1x32xf32> to vector<2x8x16x32xf32>
    %20 = arith.addf %18, %19 : vector<2x8x16x32xf32>
    %cst_5 = arith.constant 0.000000e+00 : f32
    %21 = vector.broadcast %cst_5 : f32 to vector<2x8x16x32xf32>
    %22 = arith.maximumf %20, %21 : vector<2x8x16x32xf32>
    %23 = vector.shape_cast %22 : vector<2x8x16x32xf32> to vector<2x128x32xf32>
    %24 = vector.extract_strided_slice %0 {offsets = [33, 0], sizes = [1, 32], strides = [1, 1]} : vector<35x128xf32> to vector<1x32xf32>
    %25 = vector.extract_strided_slice %0 {offsets = [33, 32], sizes = [1, 1], strides = [1, 1]} : vector<35x128xf32> to vector<1x1xf32>
    %26 = vector.shape_cast %24 : vector<1x32xf32> to vector<1x1x32xf32>
    %27 = vector.broadcast %26 : vector<1x1x32xf32> to vector<2x128x32xf32>
    %28 = arith.mulf %23, %27 : vector<2x128x32xf32>
    %cst_6 = arith.constant dense<0.000000e+00> : vector<2x128xf32>
    %29 = vector.multi_reduction <add>, %28, %cst_6 [2] : vector<2x128x32xf32> to vector<2x128xf32>
    %30 = vector.broadcast %25 : vector<1x1xf32> to vector<2x128xf32>
    %31 = arith.addf %29, %30 : vector<2x128xf32>
    %c0_7 = arith.constant 0 : index
    %c0_8 = arith.constant 0 : index
    %32 = vector.load %arg3[%c0_7, %c0_8] : memref<2x16xf32, #tpu.memory_space<vmem>>, vector<2x16xf32>
    %33 = tpu.concatenate %32, %32, %32, %32, %32, %32, %32, %32 in 1 : vector<2x16xf32>, vector<2x16xf32>, vector<2x16xf32>, vector<2x16xf32>, vector<2x16xf32>, vector<2x16xf32>, vector<2x16xf32>, vector<2x16xf32> -> vector<2x128xf32>
    %34 = arith.mulf %31, %33 : vector<2x128xf32>
    %c0_9 = arith.constant 0 : index
    %c0_10 = arith.constant 0 : index
    %35 = vector.load %arg5[%c0_9, %c0_10] : memref<2x128xf32, #tpu.memory_space<vmem>>, vector<2x128xf32>
    tpu.vector_store %arg5[%c0_9, %c0_10], %34 {strides = array<i32>} : memref<2x128xf32, #tpu.memory_space<vmem>>, vector<2x128xf32>,
    %36 = vector.extract_strided_slice %0 {offsets = [34, 0], sizes = [1, 128], strides = [1, 1]} : vector<35x128xf32> to vector<1x128xf32>
    %37 = vector.broadcast %36 : vector<1x128xf32> to vector<2x128xf32>
    %38 = arith.mulf %37, %33 : vector<2x128xf32>
    %c0_11 = arith.constant 0 : index
    %c0_12 = arith.constant 0 : index
    %39 = vector.load %arg6[%c0_11, %c0_12] : memref<2x128xf32, #tpu.memory_space<vmem>>, vector<2x128xf32>
    tpu.vector_store %arg6[%c0_11, %c0_12], %38 {strides = array<i32>} : memref<2x128xf32, #tpu.memory_space<vmem>>, vector<2x128xf32>,
    return
  }
  func.func @transform_0(%arg0: i32) -> (i32, i32) {
    %c0_i32 = arith.constant 0 : i32
    %c0_i32_0 = arith.constant 0 : i32
    return %arg0, %c0_i32 : i32, i32
  }
  func.func @transform_1(%arg0: i32) -> (i32, i32) {
    %c0_i32 = arith.constant 0 : i32
    %c0_i32_0 = arith.constant 0 : i32
    return %arg0, %c0_i32 : i32, i32
  }
  func.func @transform_2(%arg0: i32) -> (i32, i32) {
    %c0_i32 = arith.constant 0 : i32
    %c0_i32_0 = arith.constant 0 : i32
    return %arg0, %c0_i32 : i32, i32
  }
  func.func @transform_3(%arg0: i32) -> (i32, i32) {
    %c0_i32 = arith.constant 0 : i32
    %c0_i32_0 = arith.constant 0 : i32
    %c0_i32_1 = arith.constant 0 : i32
    return %c0_i32, %c0_i32_0 : i32, i32
  }
  func.func @transform_4(%arg0: i32) -> (i32, i32) {
    %c0_i32 = arith.constant 0 : i32
    %c0_i32_0 = arith.constant 0 : i32
    return %arg0, %c0_i32 : i32, i32
  }
  func.func @transform_5(%arg0: i32) -> (i32, i32) {
    %c0_i32 = arith.constant 0 : i32
    %c0_i32_0 = arith.constant 0 : i32
    return %arg0, %c0_i32 : i32, i32
  }
}

</mosaic_0001>

<llo_original>
// kernel: actor_forward.1
$region0: #{actor_forward.1}
  #allocation0 [shape = 'u32[]', space=smem, size = 0x4, offset = 0x4, fixed_abs, tag = 'smem constant byte address 0x4 - core index']
  #allocation1 [shape = 'u32[144,128]{1,0:T(1,128)}', space=vmem, size = 0x12000, scoped, tag = 'internal scratch']
  %s0 = inlined_call_operand.hbm [shape: f32[32,32], index: 0, kind: input, shape index: {}]
  %s1 = inlined_call_operand.hbm [shape: f32[16,32], index: 1, kind: input, shape index: {}]
  %s2 = inlined_call_operand.vmem [shape: f32[2,16], index: 2, kind: input, shape index: {}]
  %s3 = inlined_call_operand.hbm [shape: f32[35,128], index: 3, kind: input, shape index: {}]
  %s4 = inlined_call_operand.vmem [shape: f32[2,128], index: 4, kind: output, shape index: {0}]
  %s5 = inlined_call_operand.vmem [shape: f32[2,128], index: 5, kind: output, shape index: {1}]
  %6 = xla_tuple %s4, %s5
  %s7 = sld [smem:[#allocation0]]
  $region46: #{actor_forward.1} parent=0
    _
  %s9 = ssub.s32 1, %s7
  %s10 = scalar_select 0, %s9, %s7
  $region1: #{actor_forward.1} parent=0
    #allocation2 [shape = 'u8[16384]{0}', space=vmem, size = 0x4000, scoped, tag = 'input window, operand 0, single buffered']
    #allocation3 [shape = 's32[1]{0}', space=sflag, size = 0x4, scoped, tag = 'scoped memory for actor_forward.1']
    #allocation4 [shape = 'u8[8192]{0}', space=vmem, size = 0x2000, scoped, tag = 'input window, operand 1, single buffered']
    #allocation5 [shape = 's32[1]{0}', space=sflag, size = 0x4, scoped, tag = 'scoped memory for actor_forward.1']
    #allocation6 [shape = 'u8[20480]{0}', space=vmem, size = 0x5000, scoped, tag = 'input window, operand 3, single buffered']
    %11 = vsyncpa [#allocation3], 0
    %12 = vsyncpa [#allocation5], 0
    // Predicated region
    $region2: #{actor_forward.1} parent=1 // pred_check
      _
    $region3: #{actor_forward.1} parent=1 // pred_check_branch
      %14 = sbr.rel (0) target = $region5
    $region4: #{actor_forward.1} parent=1 // pred_region
      %s16 = ssub.s32 512, 512
      %17 = vsyncadd [#allocation3], %s16
      %s18 = sshll.u32 [#allocation2], 4
      %s19 = int_to_ptr.vmem [resolvable:$true] %s18
      %24 = dma.hbm_to_vmem [thread:$0]  %s0, 512, %s19, [#allocation3], 128, 128, 8
    $region5: #{actor_forward.1} parent=1 // pred_fallthru
      _
    // Predicated region
    $region6: #{actor_forward.1} parent=1 // pred_check
      _
    $region7: #{actor_forward.1} parent=1 // pred_check_branch
      %26 = sbr.rel (0) target = $region9
    $region8: #{actor_forward.1} parent=1 // pred_region
      %s28 = ssub.s32 256, 256
      %29 = vsyncadd [#allocation5], %s28
      %s30 = sshll.u32 [#allocation4], 4
      %s31 = int_to_ptr.vmem [resolvable:$true] %s30
      %36 = dma.hbm_to_vmem [thread:$0]  %s1, 256, %s31, [#allocation5], 128, 128, 8
    $region9: #{actor_forward.1} parent=1 // pred_fallthru
      _
    // Predicated region
    $region10: #{actor_forward.1} parent=1 // pred_check
      _
    $region11: #{actor_forward.1} parent=1 // pred_check_branch
      %38 = sbr.rel (0) target = $region13
    $region12: #{actor_forward.1} parent=1 // pred_region
      _
    $region13: #{actor_forward.1} parent=1 // pred_fallthru
      _
    // Predicated region
    $region14: #{actor_forward.1} parent=1 // pred_check
      _
    $region15: #{actor_forward.1} parent=1 // pred_check_branch
      %40 = sbr.rel (0) target = $region17
    $region16: #{actor_forward.1} parent=1 // pred_region
      %s42 = ssub.s32 640, 640
      %43 = vsyncadd [#allocation5], %s42
      %s44 = sshll.u32 [#allocation6], 4
      %s45 = int_to_ptr.vmem [resolvable:$true] %s44
      %50 = dma.hbm_to_vmem [thread:$0]  %s3, 640, %s45, [#allocation5], 128, 128, 8
    $region17: #{actor_forward.1} parent=1 // pred_fallthru
      _
    // Predicated region
    $region18: #{actor_forward.1} parent=1 // pred_check
      _
    $region19: #{actor_forward.1} parent=1 // pred_check_branch
      %52 = sbr.rel (0) target = $region21
    $region20: #{actor_forward.1} parent=1 // pred_region
      %53 = dma.done [#allocation3], 512
    $region21: #{actor_forward.1} parent=1 // pred_fallthru
      _
    // Predicated region
    $region22: #{actor_forward.1} parent=1 // pred_check
      _
    $region23: #{actor_forward.1} parent=1 // pred_check_branch
      %55 = sbr.rel (0) target = $region25
    $region24: #{actor_forward.1} parent=1 // pred_region
      %56 = dma.done [#allocation5], 256
    $region25: #{actor_forward.1} parent=1 // pred_fallthru
      _
    // Predicated region
    $region26: #{actor_forward.1} parent=1 // pred_check
      _
    $region27: #{actor_forward.1} parent=1 // pred_check_branch
      %58 = sbr.rel (0) target = $region29
    $region28: #{actor_forward.1} parent=1 // pred_region
      %59 = dma.done [#allocation5], 640
    $region29: #{actor_forward.1} parent=1 // pred_fallthru
      _
    %v60 = vld [vmem:[#allocation6] sm:$0xff]
    %v61 = vld [vmem:[#allocation6 + $0x8] sm:$0xff]
    %v62 = vld [vmem:[#allocation6 + $0x10] sm:$0xff]
    %v63 = vld [vmem:[#allocation6 + $0x18] sm:$0xff]
    %v64 = vld [vmem:[#allocation6 + $0x20] sm:$0x7]
    %v65 = vld [vmem:[#allocation2] sm:$0xff]
    %v66 = vld [vmem:[#allocation2 + $0x8] sm:$0xff]
    %v67 = vld [vmem:[#allocation2 + $0x10] sm:$0xff]
    %v68 = vld [vmem:[#allocation2 + $0x18] sm:$0xff]
    %v69 = vld [vmem:[#allocation4] sm:$0xff]
    %v70 = vld [vmem:[#allocation4 + $0x8] sm:$0xff]
    %vm71 = vcmask 261120
    %v73 = vsel %vm71, %v65, 0
    %v76 = vsel %vm71, %v66, 0
    %v79 = vsel %vm71, %v67, 0
    %v82 = vsel %vm71, %v68, 0
    %v85 = vsel %vm71, %v69, 0
    %v88 = vsel %vm71, %v70, 0
    %90 = vmatprep.subr.mxu0 0.0
    %v91 = vand.u32 %v60, 4294901760
    %92 = vmatpush1.msra.mxu0 %v91
    %93 = vmatprep.subr.mxu0 0.0
    %v94 = vand.u32 %v61, 4294901760
    %95 = vmatpush1.msra.mxu0 %v94
    %96 = vmatprep.subr.mxu0 0.0
    %v97 = vand.u32 %v62, 4294901760
    %98 = vmatpush1.msra.mxu0 %v97
    %99 = vmatprep.subr.mxu0 0.0
    %v100 = vand.u32 %v63, 4294901760
    %101 = vmatpush1.msra.mxu0 %v100
    %102 = vmatprep.subr.mxu0 0.0
    %103 = vmatpush1.msra.mxu0 0.0
    %104 = vmatprep.subr.mxu0 0.0
    %105 = vmatpush1.msra.mxu0 0.0
    %106 = vmatprep.subr.mxu0 0.0
    %107 = vmatpush1.msra.mxu0 0.0
    %108 = vmatprep.subr.mxu0 0.0
    %109 = vmatpush1.msra.mxu0 0.0
    %110 = vmatprep.subr.mxu0 0.0
    %111 = vmatpush1.msra.mxu0 0.0
    %112 = vmatprep.subr.mxu0 0.0
    %113 = vmatpush1.msra.mxu0 0.0
    %114 = vmatprep.subr.mxu0 0.0
    %115 = vmatpush1.msra.mxu0 0.0
    %116 = vmatprep.subr.mxu0 0.0
    %117 = vmatpush1.msra.mxu0 0.0
    %118 = vmatprep.subr.mxu0 0.0
    %119 = vmatpush1.msra.mxu0 0.0
    %120 = vmatprep.subr.mxu0 0.0
    %121 = vmatpush1.msra.mxu0 0.0
    %122 = vmatprep.subr.mxu0 0.0
    %123 = vmatpush1.msra.mxu0 0.0
    %124 = vmatprep.subr.mxu0 0.0
    %125 = vmatpush1.msra.mxu0 0.0
    %126 = vmatprep.subr.mxu0 0.0
    %127 = vmatpush1.msra.mxu0 0.0
    %128 = vmatprep.subr.mxu0 0.0
    %129 = vmatpush1.msra.mxu0 0.0
    %130 = vmatprep.subr.mxu0 0.0
    %131 = vmatpush1.msra.mxu0 0.0
    %132 = vmatprep.subr.mxu0 0.0
    %133 = vmatpush1.msra.mxu0 0.0
    %134 = vmatprep.subr.mxu0 0.0
    %135 = vmatpush1.msra.mxu0 0.0
    %136 = vmatprep.subr.mxu0 0.0
    %137 = vmatpush1.msra.mxu0 0.0
    %138 = vmatprep.subr.mxu0 0.0
    %139 = vmatpush1.msra.mxu0 0.0
    %140 = vmatprep.subr.mxu0 0.0
    %141 = vmatpush1.msra.mxu0 0.0
    %142 = vmatprep.subr.mxu0 0.0
    %143 = vmatpush1.msra.mxu0 0.0
    %144 = vmatprep.subr.mxu0 0.0
    %145 = vmatpush1.msra.mxu0 0.0
    %146 = vmatprep.subr.mxu0 0.0
    %147 = vmatpush1.msra.mxu0 0.0
    %148 = vmatprep.subr.mxu0 0.0
    %149 = vmatpush1.msra.mxu0 0.0
    %150 = vmatprep.subr.mxu0 0.0
    %151 = vmatpush1.msra.mxu0 0.0
    %152 = vmatprep.subr.mxu0 0.0
    %153 = vmatpush1.msra.mxu0 0.0
    %154 = vmatprep.subr.mxu0 0.0
    %155 = vmatpush1.msra.mxu0 0.0
    %156 = vmatprep.subr.mxu0 0.0
    %157 = vmatpush1.msra.mxu0 0.0
    %158 = vmatprep.mubr.f32.mxu0 0.0
    %v159 = vand.u32 %v73, 4294901760
    %v160 = vsub.f32 %v73, %v159
    %v161 = vand.u32 %v160, 4294901760
    %v162 = vsub.f32 %v160, %v161
    %v163 = vand.u32 %v162, 4294901760
    %164 = vmatmul.mubr.f32.gmra.mrb[0].mxu0 %v163
    %v165 = vpop.f32.mrb[0].mxu0
    %v166 = vadd.f32 0.0, %v165
    %v167 = vpop.f32.mrb[0].mxu0
    %168 = vmatprep.mubr.f32.mxu0 0.0
    %v169 = vand.u32 %v76, 4294901760
    %v170 = vsub.f32 %v76, %v169
    %v171 = vand.u32 %v170, 4294901760
    %v172 = vsub.f32 %v170, %v171
    %v173 = vand.u32 %v172, 4294901760
    %174 = vmatmul.mubr.f32.gmra.mrb[0].mxu0 %v173
    %v175 = vpop.f32.mrb[0].mxu0
    %v176 = vadd.f32 0.0, %v175
    %v177 = vpop.f32.mrb[0].mxu0
    %178 = vmatprep.mubr.f32.mxu0 0.0
    %v179 = vand.u32 %v79, 4294901760
    %v180 = vsub.f32 %v79, %v179
    %v181 = vand.u32 %v180, 4294901760
    %v182 = vsub.f32 %v180, %v181
    %v183 = vand.u32 %v182, 4294901760
    %184 = vmatmul.mubr.f32.gmra.mrb[0].mxu0 %v183
    %v185 = vpop.f32.mrb[0].mxu0
    %v186 = vadd.f32 0.0, %v185
    %v187 = vpop.f32.mrb[0].mxu0
    %188 = vmatprep.mubr.f32.mxu0 0.0
    %v189 = vand.u32 %v82, 4294901760
    %v190 = vsub.f32 %v82, %v189
    %v191 = vand.u32 %v190, 4294901760
    %v192 = vsub.f32 %v190, %v191
    %v193 = vand.u32 %v192, 4294901760
    %194 = vmatmul.mubr.f32.gmra.mrb[0].mxu0 %v193
    %v195 = vpop.f32.mrb[0].mxu0
    %v196 = vadd.f32 0.0, %v195
    %v197 = vpop.f32.mrb[0].mxu0
    %198 = vmatprep.mubr.f32.mxu0 0.0
    %v199 = vand.u32 %v85, 4294901760
    %v200 = vsub.f32 %v85, %v199
    %v201 = vand.u32 %v200, 4294901760
    %v202 = vsub.f32 %v200, %v201
    %v203 = vand.u32 %v202, 4294901760
    %204 = vmatmul.mubr.f32.gmra.mrb[0].mxu0 %v203
    %v205 = vpop.f32.mrb[0].mxu0
    %v206 = vadd.f32 0.0, %v205
    %v207 = vpop.f32.mrb[0].mxu0
    %208 = vmatprep.mubr.f32.mxu0 0.0
    %v209 = vand.u32 %v88, 4294901760
    %v210 = vsub.f32 %v88, %v209
    %v211 = vand.u32 %v210, 4294901760
    %v212 = vsub.f32 %v210, %v211
    %v213 = vand.u32 %v212, 4294901760
    %214 = vmatmul.mubr.f32.gmra.mrb[0].mxu0 %v213
    %v215 = vpop.f32.mrb[0].mxu0
    %v216 = vadd.f32 0.0, %v215
    %v217 = vpop.f32.mrb[0].mxu0
    %218 = vdwg.mxu0
    %219 = vmatprep.subr.mxu0 0.0
    %v220 = vand.u32 %v60, 4294901760
    %v221 = vsub.f32 %v60, %v220
    %v222 = vand.u32 %v221, 4294901760
    %v223 = vsub.f32 %v221, %v222
    %v224 = vand.u32 %v223, 4294901760
    %225 = vmatpush1.msra.mxu0 %v224
    %226 = vmatprep.subr.mxu0 0.0
    %v227 = vand.u32 %v61, 4294901760
    %v228 = vsub.f32 %v61, %v227
    %v229 = vand.u32 %v228, 4294901760
    %v230 = vsub.f32 %v228, %v229
    %v231 = vand.u32 %v230, 4294901760
    %232 = vmatpush1.msra.mxu0 %v231
    %233 = vmatprep.subr.mxu0 0.0
    %v234 = vand.u32 %v62, 4294901760
    %v235 = vsub.f32 %v62, %v234
    %v236 = vand.u32 %v235, 4294901760
    %v237 = vsub.f32 %v235, %v236
    %v238 = vand.u32 %v237, 4294901760
    %239 = vmatpush1.msra.mxu0 %v238
    %240 = vmatprep.subr.mxu0 0.0
    %v241 = vand.u32 %v63, 4294901760
    %v242 = vsub.f32 %v63, %v241
    %v243 = vand.u32 %v242, 4294901760
    %v244 = vsub.f32 %v242, %v243
    %v245 = vand.u32 %v244, 4294901760
    %246 = vmatpush1.msra.mxu0 %v245
    %247 = vmatprep.subr.mxu0 0.0
    %248 = vmatpush1.msra.mxu0 0.0
    %249 = vmatprep.subr.mxu0 0.0
    %250 = vmatpush1.msra.mxu0 0.0
    %251 = vmatprep.subr.mxu0 0.0
    %252 = vmatpush1.msra.mxu0 0.0
    %253 = vmatprep.subr.mxu0 0.0
    %254 = vmatpush1.msra.mxu0 0.0
    %255 = vmatprep.subr.mxu0 0.0
    %256 = vmatpush1.msra.mxu0 0.0
    %257 = vmatprep.subr.mxu0 0.0
    %258 = vmatpush1.msra.mxu0 0.0
    %259 = vmatprep.subr.mxu0 0.0
    %260 = vmatpush1.msra.mxu0 0.0
    %261 = vmatprep.subr.mxu0 0.0
    %262 = vmatpush1.msra.mxu0 0.0
    %263 = vmatprep.subr.mxu0 0.0
    %264 = vmatpush1.msra.mxu0 0.0
    %265 = vmatprep.subr.mxu0 0.0
    %266 = vmatpush1.msra.mxu0 0.0
    %267 = vmatprep.subr.mxu0 0.0
    %268 = vmatpush1.msra.mxu0 0.0
    %269 = vmatprep.subr.mxu0 0.0
    %270 = vmatpush1.msra.mxu0 0.0
    %271 = vmatprep.subr.mxu0 0.0
    %272 = vmatpush1.msra.mxu0 0.0
    %273 = vmatprep.subr.mxu0 0.0
    %274 = vmatpush1.msra.mxu0 0.0
    %275 = vmatprep.subr.mxu0 0.0
    %276 = vmatpush1.msra.mxu0 0.0
    %277 = vmatprep.subr.mxu0 0.0
    %278 = vmatpush1.msra.mxu0 0.0
    %279 = vmatprep.subr.mxu0 0.0
    %280 = vmatpush1.msra.mxu0 0.0
    %281 = vmatprep.subr.mxu0 0.0
    %282 = vmatpush1.msra.mxu0 0.0
    %283 = vmatprep.subr.mxu0 0.0
    %284 = vmatpush1.msra.mxu0 0.0
    %285 = vmatprep.subr.mxu0 0.0
    %286 = vmatpush1.msra.mxu0 0.0
    %287 = vmatprep.subr.mxu0 0.0
    %288 = vmatpush1.msra.mxu0 0.0
    %289 = vmatprep.subr.mxu0 0.0
    %290 = vmatpush1.msra.mxu0 0.0
    %291 = vmatprep.subr.mxu0 0.0
    %292 = vmatpush1.msra.mxu0 0.0
    %293 = vmatprep.subr.mxu0 0.0
    %294 = vmatpush1.msra.mxu0 0.0
    %295 = vmatprep.subr.mxu0 0.0
    %296 = vmatpush1.msra.mxu0 0.0
    %297 = vmatprep.subr.mxu0 0.0
    %298 = vmatpush1.msra.mxu0 0.0
    %299 = vmatprep.subr.mxu0 0.0
    %300 = vmatpush1.msra.mxu0 0.0
    %301 = vmatprep.subr.mxu0 0.0
    %302 = vmatpush1.msra.mxu0 0.0
    %303 = vmatprep.mubr.f32.mxu0 0.0
    %v304 = vand.u32 %v73, 4294901760
    %305 = vmatmul.mubr.f32.gmra.mrb[0].mxu0 %v304
    %v306 = vpop.f32.mrb[0].mxu0
    %v307 = vadd.f32 %v166, %v306
    %v308 = vpop.f32.mrb[0].mxu0
    %309 = vmatprep.mubr.f32.mxu0 0.0
    %v310 = vand.u32 %v76, 4294901760
    %311 = vmatmul.mubr.f32.gmra.mrb[0].mxu0 %v310
    %v312 = vpop.f32.mrb[0].mxu0
    %v313 = vadd.f32 %v176, %v312
    %v314 = vpop.f32.mrb[0].mxu0
    %315 = vmatprep.mubr.f32.mxu0 0.0
    %v316 = vand.u32 %v79, 4294901760
    %317 = vmatmul.mubr.f32.gmra.mrb[0].mxu0 %v316
    %v318 = vpop.f32.mrb[0].mxu0
    %v319 = vadd.f32 %v186, %v318
    %v320 = vpop.f32.mrb[0].mxu0
    %321 = vmatprep.mubr.f32.mxu0 0.0
    %v322 = vand.u32 %v82, 4294901760
    %323 = vmatmul.mubr.f32.gmra.mrb[0].mxu0 %v322
    %v324 = vpop.f32.mrb[0].mxu0
    %v325 = vadd.f32 %v196, %v324
    %v326 = vpop.f32.mrb[0].mxu0
    %327 = vmatprep.mubr.f32.mxu0 0.0
    %v328 = vand.u32 %v85, 4294901760
    %329 = vmatmul.mubr.f32.gmra.mrb[0].mxu0 %v328
    %v330 = vpop.f32.mrb[0].mxu0
    %v331 = vadd.f32 %v206, %v330
    %v332 = vpop.f32.mrb[0].mxu0
    %333 = vmatprep.mubr.f32.mxu0 0.0
    %v334 = vand.u32 %v88, 4294901760
    %335 = vmatmul.mubr.f32.gmra.mrb[0].mxu0 %v334
    %v336 = vpop.f32.mrb[0].mxu0
    %v337 = vadd.f32 %v216, %v336
    %v338 = vpop.f32.mrb[0].mxu0
    %339 = vdwg.mxu0
    %340 = vmatprep.subr.mxu0 0.0
    %v341 = vand.u32 %v60, 4294901760
    %v342 = vsub.f32 %v60, %v341
    %343 = vmatpush1.msra.mxu0 %v342
    %344 = vmatprep.subr.mxu0 0.0
    %v345 = vand.u32 %v61, 4294901760
    %v346 = vsub.f32 %v61, %v345
    %347 = vmatpush1.msra.mxu0 %v346
    %348 = vmatprep.subr.mxu0 0.0
    %v349 = vand.u32 %v62, 4294901760
    %v350 = vsub.f32 %v62, %v349
    %351 = vmatpush1.msra.mxu0 %v350
    %352 = vmatprep.subr.mxu0 0.0
    %v353 = vand.u32 %v63, 4294901760
    %v354 = vsub.f32 %v63, %v353
    %355 = vmatpush1.msra.mxu0 %v354
    %356 = vmatprep.subr.mxu0 0.0
    %357 = vmatpush1.msra.mxu0 0.0
    %358 = vmatprep.subr.mxu0 0.0
    %359 = vmatpush1.msra.mxu0 0.0
    %360 = vmatprep.subr.mxu0 0.0
    %361 = vmatpush1.msra.mxu0 0.0
    %362 = vmatprep.subr.mxu0 0.0
    %363 = vmatpush1.msra.mxu0 0.0
    %364 = vmatprep.subr.mxu0 0.0
    %365 = vmatpush1.msra.mxu0 0.0
    %366 = vmatprep.subr.mxu0 0.0
    %367 = vmatpush1.msra.mxu0 0.0
    %368 = vmatprep.subr.mxu0 0.0
    %369 = vmatpush1.msra.mxu0 0.0
    %370 = vmatprep.subr.mxu0 0.0
    %371 = vmatpush1.msra.mxu0 0.0
    %372 = vmatprep.subr.mxu0 0.0
    %373 = vmatpush1.msra.mxu0 0.0
    %374 = vmatprep.subr.mxu0 0.0
    %375 = vmatpush1.msra.mxu0 0.0
    %376 = vmatprep.subr.mxu0 0.0
    %377 = vmatpush1.msra.mxu0 0.0
    %378 = vmatprep.subr.mxu0 0.0
    %379 = vmatpush1.msra.mxu0 0.0
    %380 = vmatprep.subr.mxu0 0.0
    %381 = vmatpush1.msra.mxu0 0.0
    %382 = vmatprep.subr.mxu0 0.0
    %383 = vmatpush1.msra.mxu0 0.0
    %384 = vmatprep.subr.mxu0 0.0
    %385 = vmatpush1.msra.mxu0 0.0
    %386 = vmatprep.subr.mxu0 0.0
    %387 = vmatpush1.msra.mxu0 0.0
    %388 = vmatprep.subr.mxu0 0.0
    %389 = vmatpush1.msra.mxu0 0.0
    %390 = vmatprep.subr.mxu0 0.0
    %391 = vmatpush1.msra.mxu0 0.0
    %392 = vmatprep.subr.mxu0 0.0
    %393 = vmatpush1.msra.mxu0 0.0
    %394 = vmatprep.subr.mxu0 0.0
    %395 = vmatpush1.msra.mxu0 0.0
    %396 = vmatprep.subr.mxu0 0.0
    %397 = vmatpush1.msra.mxu0 0.0
    %398 = vmatprep.subr.mxu0 0.0
    %399 = vmatpush1.msra.mxu0 0.0
    %400 = vmatprep.subr.mxu0 0.0
    %401 = vmatpush1.msra.mxu0 0.0
    %402 = vmatprep.subr.mxu0 0.0
    %403 = vmatpush1.msra.mxu0 0.0
    %404 = vmatprep.subr.mxu0 0.0
    %405 = vmatpush1.msra.mxu0 0.0
    %406 = vmatprep.subr.mxu0 0.0
    %407 = vmatpush1.msra.mxu0 0.0
    %408 = vmatprep.subr.mxu0 0.0
    %409 = vmatpush1.msra.mxu0 0.0
    %410 = vmatprep.subr.mxu0 0.0
    %411 = vmatpush1.msra.mxu0 0.0
    %412 = vmatprep.mubr.f32.mxu0 0.0
    %v413 = vand.u32 %v73, 4294901760
    %v414 = vsub.f32 %v73, %v413
    %415 = vmatmul.mubr.f32.gmra.mrb[0].mxu0 %v414
    %v416 = vpop.f32.mrb[0].mxu0
    %v417 = vadd.f32 %v307, %v416
    %v418 = vpop.f32.mrb[0].mxu0
    %419 = vmatprep.mubr.f32.mxu0 0.0
    %v420 = vand.u32 %v76, 4294901760
    %v421 = vsub.f32 %v76, %v420
    %422 = vmatmul.mubr.f32.gmra.mrb[0].mxu0 %v421
    %v423 = vpop.f32.mrb[0].mxu0
    %v424 = vadd.f32 %v313, %v423
    %v425 = vpop.f32.mrb[0].mxu0
    %426 = vmatprep.mubr.f32.mxu0 0.0
    %v427 = vand.u32 %v79, 4294901760
    %v428 = vsub.f32 %v79, %v427
    %429 = vmatmul.mubr.f32.gmra.mrb[0].mxu0 %v428
    %v430 = vpop.f32.mrb[0].mxu0
    %v431 = vadd.f32 %v319, %v430
    %v432 = vpop.f32.mrb[0].mxu0
    %433 = vmatprep.mubr.f32.mxu0 0.0
    %v434 = vand.u32 %v82, 4294901760
    %v435 = vsub.f32 %v82, %v434
    %436 = vmatmul.mubr.f32.gmra.mrb[0].mxu0 %v435
    %v437 = vpop.f32.mrb[0].mxu0
    %v438 = vadd.f32 %v325, %v437
    %v439 = vpop.f32.mrb[0].mxu0
    %440 = vmatprep.mubr.f32.mxu0 0.0
    %v441 = vand.u32 %v85, 4294901760
    %v442 = vsub.f32 %v85, %v441
    %443 = vmatmul.mubr.f32.gmra.mrb[0].mxu0 %v442
    %v444 = vpop.f32.mrb[0].mxu0
    %v445 = vadd.f32 %v331, %v444
    %v446 = vpop.f32.mrb[0].mxu0
    %447 = vmatprep.mubr.f32.mxu0 0.0
    %v448 = vand.u32 %v88, 4294901760
    %v449 = vsub.f32 %v88, %v448
    %450 = vmatmul.mubr.f32.gmra.mrb[0].mxu0 %v449
    %v451 = vpop.f32.mrb[0].mxu0
    %v452 = vadd.f32 %v337, %v451
    %v453 = vpop.f32.mrb[0].mxu0
    %454 = vdwg.mxu0
    %455 = vmatprep.subr.mxu0 0.0
    %v456 = vand.u32 %v60, 4294901760
    %457 = vmatpush1.msra.mxu0 %v456
    %458 = vmatprep.subr.mxu0 0.0
    %v459 = vand.u32 %v61, 4294901760
    %460 = vmatpush1.msra.mxu0 %v459
    %461 = vmatprep.subr.mxu0 0.0
    %v462 = vand.u32 %v62, 4294901760
    %463 = vmatpush1.msra.mxu0 %v462
    %464 = vmatprep.subr.mxu0 0.0
    %v465 = vand.u32 %v63, 4294901760
    %466 = vmatpush1.msra.mxu0 %v465
    %467 = vmatprep.subr.mxu0 0.0
    %468 = vmatpush1.msra.mxu0 0.0
    %469 = vmatprep.subr.mxu0 0.0
    %470 = vmatpush1.msra.mxu0 0.0
    %471 = vmatprep.subr.mxu0 0.0
    %472 = vmatpush1.msra.mxu0 0.0
    %473 = vmatprep.subr.mxu0 0.0
    %474 = vmatpush1.msra.mxu0 0.0
    %475 = vmatprep.subr.mxu0 0.0
    %476 = vmatpush1.msra.mxu0 0.0
    %477 = vmatprep.subr.mxu0 0.0
    %478 = vmatpush1.msra.mxu0 0.0
    %479 = vmatprep.subr.mxu0 0.0
    %480 = vmatpush1.msra.mxu0 0.0
    %481 = vmatprep.subr.mxu0 0.0
    %482 = vmatpush1.msra.mxu0 0.0
    %483 = vmatprep.subr.mxu0 0.0
    %484 = vmatpush1.msra.mxu0 0.0
    %485 = vmatprep.subr.mxu0 0.0
    %486 = vmatpush1.msra.mxu0 0.0
    %487 = vmatprep.subr.mxu0 0.0
    %488 = vmatpush1.msra.mxu0 0.0
    %489 = vmatprep.subr.mxu0 0.0
    %490 = vmatpush1.msra.mxu0 0.0
    %491 = vmatprep.subr.mxu0 0.0
    %492 = vmatpush1.msra.mxu0 0.0
    %493 = vmatprep.subr.mxu0 0.0
    %494 = vmatpush1.msra.mxu0 0.0
    %495 = vmatprep.subr.mxu0 0.0
    %496 = vmatpush1.msra.mxu0 0.0
    %497 = vmatprep.subr.mxu0 0.0
    %498 = vmatpush1.msra.mxu0 0.0
    %499 = vmatprep.subr.mxu0 0.0
    %500 = vmatpush1.msra.mxu0 0.0
    %501 = vmatprep.subr.mxu0 0.0
    %502 = vmatpush1.msra.mxu0 0.0
    %503 = vmatprep.subr.mxu0 0.0
    %504 = vmatpush1.msra.mxu0 0.0
    %505 = vmatprep.subr.mxu0 0.0
    %506 = vmatpush1.msra.mxu0 0.0
    %507 = vmatprep.subr.mxu0 0.0
    %508 = vmatpush1.msra.mxu0 0.0
    %509 = vmatprep.subr.mxu0 0.0
    %510 = vmatpush1.msra.mxu0 0.0
    %511 = vmatprep.subr.mxu0 0.0
    %512 = vmatpush1.msra.mxu0 0.0
    %513 = vmatprep.subr.mxu0 0.0
    %514 = vmatpush1.msra.mxu0 0.0
    %515 = vmatprep.subr.mxu0 0.0
    %516 = vmatpush1.msra.mxu0 0.0
    %517 = vmatprep.subr.mxu0 0.0
    %518 = vmatpush1.msra.mxu0 0.0
    %519 = vmatprep.subr.mxu0 0.0
    %520 = vmatpush1.msra.mxu0 0.0
    %521 = vmatprep.subr.mxu0 0.0
    %522 = vmatpush1.msra.mxu0 0.0
    %523 = vmatprep.mubr.f32.mxu0 0.0
    %v524 = vand.u32 %v73, 4294901760
    %v525 = vsub.f32 %v73, %v524
    %v526 = vand.u32 %v525, 4294901760
    %527 = vmatmul.mubr.f32.gmra.mrb[0].mxu0 %v526
    %v528 = vpop.f32.mrb[0].mxu0
    %v529 = vadd.f32 %v417, %v528
    %v530 = vpop.f32.mrb[0].mxu0
    %531 = vmatprep.mubr.f32.mxu0 0.0
    %v532 = vand.u32 %v76, 4294901760
    %v533 = vsub.f32 %v76, %v532
    %v534 = vand.u32 %v533, 4294901760
    %535 = vmatmul.mubr.f32.gmra.mrb[0].mxu0 %v534
    %v536 = vpop.f32.mrb[0].mxu0
    %v537 = vadd.f32 %v424, %v536
    %v538 = vpop.f32.mrb[0].mxu0
    %539 = vmatprep.mubr.f32.mxu0 0.0
    %v540 = vand.u32 %v79, 4294901760
    %v541 = vsub.f32 %v79, %v540
    %v542 = vand.u32 %v541, 4294901760
    %543 = vmatmul.mubr.f32.gmra.mrb[0].mxu0 %v542
    %v544 = vpop.f32.mrb[0].mxu0
    %v545 = vadd.f32 %v431, %v544
    %v546 = vpop.f32.mrb[0].mxu0
    %547 = vmatprep.mubr.f32.mxu0 0.0
    %v548 = vand.u32 %v82, 4294901760
    %v549 = vsub.f32 %v82, %v548
    %v550 = vand.u32 %v549, 4294901760
    %551 = vmatmul.mubr.f32.gmra.mrb[0].mxu0 %v550
    %v552 = vpop.f32.mrb[0].mxu0
    %v553 = vadd.f32 %v438, %v552
    %v554 = vpop.f32.mrb[0].mxu0
    %555 = vmatprep.mubr.f32.mxu0 0.0
    %v556 = vand.u32 %v85, 4294901760
    %v557 = vsub.f32 %v85, %v556
    %v558 = vand.u32 %v557, 4294901760
    %559 = vmatmul.mubr.f32.gmra.mrb[0].mxu0 %v558
    %v560 = vpop.f32.mrb[0].mxu0
    %v561 = vadd.f32 %v445, %v560
    %v562 = vpop.f32.mrb[0].mxu0
    %563 = vmatprep.mubr.f32.mxu0 0.0
    %v564 = vand.u32 %v88, 4294901760
    %v565 = vsub.f32 %v88, %v564
    %v566 = vand.u32 %v565, 4294901760
    %567 = vmatmul.mubr.f32.gmra.mrb[0].mxu0 %v566
    %v568 = vpop.f32.mrb[0].mxu0
    %v569 = vadd.f32 %v452, %v568
    %v570 = vpop.f32.mrb[0].mxu0
    %571 = vdwg.mxu0
    %572 = vmatprep.subr.mxu0 0.0
    %v573 = vand.u32 %v60, 4294901760
    %v574 = vsub.f32 %v60, %v573
    %v575 = vand.u32 %v574, 4294901760
    %576 = vmatpush1.msra.mxu0 %v575
    %577 = vmatprep.subr.mxu0 0.0
    %v578 = vand.u32 %v61, 4294901760
    %v579 = vsub.f32 %v61, %v578
    %v580 = vand.u32 %v579, 4294901760
    %581 = vmatpush1.msra.mxu0 %v580
    %582 = vmatprep.subr.mxu0 0.0
    %v583 = vand.u32 %v62, 4294901760
    %v584 = vsub.f32 %v62, %v583
    %v585 = vand.u32 %v584, 4294901760
    %586 = vmatpush1.msra.mxu0 %v585
    %587 = vmatprep.subr.mxu0 0.0
    %v588 = vand.u32 %v63, 4294901760
    %v589 = vsub.f32 %v63, %v588
    %v590 = vand.u32 %v589, 4294901760
    %591 = vmatpush1.msra.mxu0 %v590
    %592 = vmatprep.subr.mxu0 0.0
    %593 = vmatpush1.msra.mxu0 0.0
    %594 = vmatprep.subr.mxu0 0.0
    %595 = vmatpush1.msra.mxu0 0.0
    %596 = vmatprep.subr.mxu0 0.0
    %597 = vmatpush1.msra.mxu0 0.0
    %598 = vmatprep.subr.mxu0 0.0
    %599 = vmatpush1.msra.mxu0 0.0
    %600 = vmatprep.subr.mxu0 0.0
    %601 = vmatpush1.msra.mxu0 0.0
    %602 = vmatprep.subr.mxu0 0.0
    %603 = vmatpush1.msra.mxu0 0.0
    %604 = vmatprep.subr.mxu0 0.0
    %605 = vmatpush1.msra.mxu0 0.0
    %606 = vmatprep.subr.mxu0 0.0
    %607 = vmatpush1.msra.mxu0 0.0
    %608 = vmatprep.subr.mxu0 0.0
    %609 = vmatpush1.msra.mxu0 0.0
    %610 = vmatprep.subr.mxu0 0.0
    %611 = vmatpush1.msra.mxu0 0.0
    %612 = vmatprep.subr.mxu0 0.0
    %613 = vmatpush1.msra.mxu0 0.0
    %614 = vmatprep.subr.mxu0 0.0
    %615 = vmatpush1.msra.mxu0 0.0
    %616 = vmatprep.subr.mxu0 0.0
    %617 = vmatpush1.msra.mxu0 0.0
    %618 = vmatprep.subr.mxu0 0.0
    %619 = vmatpush1.msra.mxu0 0.0
    %620 = vmatprep.subr.mxu0 0.0
    %621 = vmatpush1.msra.mxu0 0.0
    %622 = vmatprep.subr.mxu0 0.0
    %623 = vmatpush1.msra.mxu0 0.0
    %624 = vmatprep.subr.mxu0 0.0
    %625 = vmatpush1.msra.mxu0 0.0
    %626 = vmatprep.subr.mxu0 0.0
    %627 = vmatpush1.msra.mxu0 0.0
    %628 = vmatprep.subr.mxu0 0.0
    %629 = vmatpush1.msra.mxu0 0.0
    %630 = vmatprep.subr.mxu0 0.0
    %631 = vmatpush1.msra.mxu0 0.0
    %632 = vmatprep.subr.mxu0 0.0
    %633 = vmatpush1.msra.mxu0 0.0
    %634 = vmatprep.subr.mxu0 0.0
    %635 = vmatpush1.msra.mxu0 0.0
    %636 = vmatprep.subr.mxu0 0.0
    %637 = vmatpush1.msra.mxu0 0.0
    %638 = vmatprep.subr.mxu0 0.0
    %639 = vmatpush1.msra.mxu0 0.0
    %640 = vmatprep.subr.mxu0 0.0
    %641 = vmatpush1.msra.mxu0 0.0
    %642 = vmatprep.subr.mxu0 0.0
    %643 = vmatpush1.msra.mxu0 0.0
    %644 = vmatprep.subr.mxu0 0.0
    %645 = vmatpush1.msra.mxu0 0.0
    %646 = vmatprep.subr.mxu0 0.0
    %647 = vmatpush1.msra.mxu0 0.0
    %648 = vmatprep.mubr.f32.mxu0 0.0
    %v649 = vand.u32 %v73, 4294901760
    %650 = vmatmul.mubr.f32.gmra.mrb[0].mxu0 %v649
    %v651 = vpop.f32.mrb[0].mxu0
    %v652 = vadd.f32 %v529, %v651
    %v653 = vpop.f32.mrb[0].mxu0
    %654 = vmatprep.mubr.f32.mxu0 0.0
    %v655 = vand.u32 %v76, 4294901760
    %656 = vmatmul.mubr.f32.gmra.mrb[0].mxu0 %v655
    %v657 = vpop.f32.mrb[0].mxu0
    %v658 = vadd.f32 %v537, %v657
    %v659 = vpop.f32.mrb[0].mxu0
    %660 = vmatprep.mubr.f32.mxu0 0.0
    %v661 = vand.u32 %v79, 4294901760
    %662 = vmatmul.mubr.f32.gmra.mrb[0].mxu0 %v661
    %v663 = vpop.f32.mrb[0].mxu0
    %v664 = vadd.f32 %v545, %v663
    %v665 = vpop.f32.mrb[0].mxu0
    %666 = vmatprep.mubr.f32.mxu0 0.0
    %v667 = vand.u32 %v82, 4294901760
    %668 = vmatmul.mubr.f32.gmra.mrb[0].mxu0 %v667
    %v669 = vpop.f32.mrb[0].mxu0
    %v670 = vadd.f32 %v553, %v669
    %v671 = vpop.f32.mrb[0].mxu0
    %672 = vmatprep.mubr.f32.mxu0 0.0
    %v673 = vand.u32 %v85, 4294901760
    %674 = vmatmul.mubr.f32.gmra.mrb[0].mxu0 %v673
    %v675 = vpop.f32.mrb[0].mxu0
    %v676 = vadd.f32 %v561, %v675
    %v677 = vpop.f32.mrb[0].mxu0
    %678 = vmatprep.mubr.f32.mxu0 0.0
    %v679 = vand.u32 %v88, 4294901760
    %680 = vmatmul.mubr.f32.gmra.mrb[0].mxu0 %v679
    %v681 = vpop.f32.mrb[0].mxu0
    %v682 = vadd.f32 %v569, %v681
    %v683 = vpop.f32.mrb[0].mxu0
    %684 = vdwg.mxu0
    %685 = vmatprep.subr.mxu0 0.0
    %v686 = vand.u32 %v60, 4294901760
    %687 = vmatpush1.msra.mxu0 %v686
    %688 = vmatprep.subr.mxu0 0.0
    %v689 = vand.u32 %v61, 4294901760
    %690 = vmatpush1.msra.mxu0 %v689
    %691 = vmatprep.subr.mxu0 0.0
    %v692 = vand.u32 %v62, 4294901760
    %693 = vmatpush1.msra.mxu0 %v692
    %694 = vmatprep.subr.mxu0 0.0
    %v695 = vand.u32 %v63, 4294901760
    %696 = vmatpush1.msra.mxu0 %v695
    %697 = vmatprep.subr.mxu0 0.0
    %698 = vmatpush1.msra.mxu0 0.0
    %699 = vmatprep.subr.mxu0 0.0
    %700 = vmatpush1.msra.mxu0 0.0
    %701 = vmatprep.subr.mxu0 0.0
    %702 = vmatpush1.msra.mxu0 0.0
    %703 = vmatprep.subr.mxu0 0.0
    %704 = vmatpush1.msra.mxu0 0.0
    %705 = vmatprep.subr.mxu0 0.0
    %706 = vmatpush1.msra.mxu0 0.0
    %707 = vmatprep.subr.mxu0 0.0
    %708 = vmatpush1.msra.mxu0 0.0
    %709 = vmatprep.subr.mxu0 0.0
    %710 = vmatpush1.msra.mxu0 0.0
    %711 = vmatprep.subr.mxu0 0.0
    %712 = vmatpush1.msra.mxu0 0.0
    %713 = vmatprep.subr.mxu0 0.0
    %714 = vmatpush1.msra.mxu0 0.0
    %715 = vmatprep.subr.mxu0 0.0
    %716 = vmatpush1.msra.mxu0 0.0
    %717 = vmatprep.subr.mxu0 0.0
    %718 = vmatpush1.msra.mxu0 0.0
    %719 = vmatprep.subr.mxu0 0.0
    %720 = vmatpush1.msra.mxu0 0.0
    %721 = vmatprep.subr.mxu0 0.0
    %722 = vmatpush1.msra.mxu0 0.0
    %723 = vmatprep.subr.mxu0 0.0
    %724 = vmatpush1.msra.mxu0 0.0
    %725 = vmatprep.subr.mxu0 0.0
    %726 = vmatpush1.msra.mxu0 0.0
    %727 = vmatprep.subr.mxu0 0.0
    %728 = vmatpush1.msra.mxu0 0.0
    %729 = vmatprep.subr.mxu0 0.0
    %730 = vmatpush1.msra.mxu0 0.0
    %731 = vmatprep.subr.mxu0 0.0
    %732 = vmatpush1.msra.mxu0 0.0
    %733 = vmatprep.subr.mxu0 0.0
    %734 = vmatpush1.msra.mxu0 0.0
    %735 = vmatprep.subr.mxu0 0.0
    %736 = vmatpush1.msra.mxu0 0.0
    %737 = vmatprep.subr.mxu0 0.0
    %738 = vmatpush1.msra.mxu0 0.0
    %739 = vmatprep.subr.mxu0 0.0
    %740 = vmatpush1.msra.mxu0 0.0
    %741 = vmatprep.subr.mxu0 0.0
    %742 = vmatpush1.msra.mxu0 0.0
    %743 = vmatprep.subr.mxu0 0.0
    %744 = vmatpush1.msra.mxu0 0.0
    %745 = vmatprep.subr.mxu0 0.0
    %746 = vmatpush1.msra.mxu0 0.0
    %747 = vmatprep.subr.mxu0 0.0
    %748 = vmatpush1.msra.mxu0 0.0
    %749 = vmatprep.subr.mxu0 0.0
    %750 = vmatpush1.msra.mxu0 0.0
    %751 = vmatprep.subr.mxu0 0.0
    %752 = vmatpush1.msra.mxu0 0.0
    %753 = vmatprep.mubr.f32.mxu0 0.0
    %v754 = vand.u32 %v73, 4294901760
    %755 = vmatmul.mubr.f32.gmra.mrb[0].mxu0 %v754
    %v756 = vpop.f32.mrb[0].mxu0
    %v757 = vadd.f32 %v652, %v756
    %v758 = vpop.f32.mrb[0].mxu0
    %759 = vmatprep.mubr.f32.mxu0 0.0
    %v760 = vand.u32 %v76, 4294901760
    %761 = vmatmul.mubr.f32.gmra.mrb[0].mxu0 %v760
    %v762 = vpop.f32.mrb[0].mxu0
    %v763 = vadd.f32 %v658, %v762
    %v764 = vpop.f32.mrb[0].mxu0
    %765 = vmatprep.mubr.f32.mxu0 0.0
    %v766 = vand.u32 %v79, 4294901760
    %767 = vmatmul.mubr.f32.gmra.mrb[0].mxu0 %v766
    %v768 = vpop.f32.mrb[0].mxu0
    %v769 = vadd.f32 %v664, %v768
    %v770 = vpop.f32.mrb[0].mxu0
    %771 = vmatprep.mubr.f32.mxu0 0.0
    %v772 = vand.u32 %v82, 4294901760
    %773 = vmatmul.mubr.f32.gmra.mrb[0].mxu0 %v772
    %v774 = vpop.f32.mrb[0].mxu0
    %v775 = vadd.f32 %v670, %v774
    %v776 = vpop.f32.mrb[0].mxu0
    %777 = vmatprep.mubr.f32.mxu0 0.0
    %v778 = vand.u32 %v85, 4294901760
    %779 = vmatmul.mubr.f32.gmra.mrb[0].mxu0 %v778
    %v780 = vpop.f32.mrb[0].mxu0
    %v781 = vadd.f32 %v676, %v780
    %v782 = vpop.f32.mrb[0].mxu0
    %783 = vmatprep.mubr.f32.mxu0 0.0
    %v784 = vand.u32 %v88, 4294901760
    %785 = vmatmul.mubr.f32.gmra.mrb[0].mxu0 %v784
    %v786 = vpop.f32.mrb[0].mxu0
    %v787 = vadd.f32 %v682, %v786
    %v788 = vpop.f32.mrb[0].mxu0
    %789 = vdwg.mxu0
    %v790 = vlaneseq
    %v791 = vshrl.u32 %v790, 7
    %v792 = vsub.s32 0, %v791
    %v793 = vrot.slane %v64, %v792
    %v794 = vadd.f32 %v757, %v793
    %v795 = vadd.f32 %v763, %v793
    %v796 = vadd.f32 %v769, %v793
    %v797 = vadd.f32 %v775, %v793
    %v798 = vadd.f32 %v781, %v793
    %v799 = vadd.f32 %v787, %v793
    %v802 = vcombine.high %v798, %v798
    %v804 = vunpack.c.l.s4 1966171168
    %v805 = vunpack.c.0.s8 %v804
    %v806 = vlaneseq
    %v807 = vshrl.u32 %v806, 7
    %v808 = vsub.s32 %v805, %v807
    %v809 = vrot.slane %v798, %v808
    %v811 = vunpack.c.l.s4 1966171168
    %v812 = vunpack.c.0.s8 %v811
    %v813 = vlaneseq
    %v814 = vshrl.u32 %v813, 7
    %v815 = vsub.s32 %v812, %v814
    %v816 = vrot.slane %v802, %v815
    %v817 = vcombine.high %v809, %v809
    %v818 = vcombine.high %v816, %v816
    %v820 = vunpack.c.l.s4 1966171168
    %v821 = vunpack.c.0.s8 %v820
    %v822 = vlaneseq
    %v823 = vshrl.u32 %v822, 7
    %v824 = vsub.s32 %v821, %v823
    %v825 = vrot.slane %v809, %v824
    %v827 = vunpack.c.l.s4 1966171168
    %v828 = vunpack.c.0.s8 %v827
    %v829 = vlaneseq
    %v830 = vshrl.u32 %v829, 7
    %v831 = vsub.s32 %v828, %v830
    %v832 = vrot.slane %v816, %v831
    %v834 = vunpack.c.l.s4 1966171168
    %v835 = vunpack.c.0.s8 %v834
    %v836 = vlaneseq
    %v837 = vshrl.u32 %v836, 7
    %v838 = vsub.s32 %v835, %v837
    %v839 = vrot.slane %v817, %v838
    %v841 = vunpack.c.l.s4 1966171168
    %v842 = vunpack.c.0.s8 %v841
    %v843 = vlaneseq
    %v844 = vshrl.u32 %v843, 7
    %v845 = vsub.s32 %v842, %v844
    %v846 = vrot.slane %v818, %v845
    %v847 = vcombine.high %v825, %v825
    %v848 = vcombine.high %v832, %v832
    %v849 = vcombine.high %v839, %v839
    %v850 = vcombine.high %v846, %v846
    %v851 = vcombine.high %v799, %v799
    %v853 = vunpack.c.l.s4 1966171168
    %v854 = vunpack.c.0.s8 %v853
    %v855 = vlaneseq
    %v856 = vshrl.u32 %v855, 7
    %v857 = vsub.s32 %v854, %v856
    %v858 = vrot.slane %v799, %v857
    %v860 = vunpack.c.l.s4 1966171168
    %v861 = vunpack.c.0.s8 %v860
    %v862 = vlaneseq
    %v863 = vshrl.u32 %v862, 7
    %v864 = vsub.s32 %v861, %v863
    %v865 = vrot.slane %v851, %v864
    %v866 = vcombine.high %v858, %v858
    %v867 = vcombine.high %v865, %v865
    %v869 = vunpack.c.l.s4 1966171168
    %v870 = vunpack.c.0.s8 %v869
    %v871 = vlaneseq
    %v872 = vshrl.u32 %v871, 7
    %v873 = vsub.s32 %v870, %v872
    %v874 = vrot.slane %v858, %v873
    %v876 = vunpack.c.l.s4 1966171168
    %v877 = vunpack.c.0.s8 %v876
    %v878 = vlaneseq
    %v879 = vshrl.u32 %v878, 7
    %v880 = vsub.s32 %v877, %v879
    %v881 = vrot.slane %v865, %v880
    %v883 = vunpack.c.l.s4 1966171168
    %v884 = vunpack.c.0.s8 %v883
    %v885 = vlaneseq
    %v886 = vshrl.u32 %v885, 7
    %v887 = vsub.s32 %v884, %v886
    %v888 = vrot.slane %v866, %v887
    %v890 = vunpack.c.l.s4 1966171168
    %v891 = vunpack.c.0.s8 %v890
    %v892 = vlaneseq
    %v893 = vshrl.u32 %v892, 7
    %v894 = vsub.s32 %v891, %v893
    %v895 = vrot.slane %v867, %v894
    %v896 = vcombine.high %v874, %v874
    %v897 = vcombine.high %v881, %v881
    %v898 = vcombine.high %v888, %v888
    %v899 = vcombine.high %v895, %v895
    %v900 = vlaneseq
    %v901 = vshrl.u32 %v900, 7
    %v902 = vsub.s32 0, %v901
    %v903 = vrot.slane %v825, %v902
    %v904 = vlaneseq
    %v905 = vshrl.u32 %v904, 7
    %v906 = vsub.s32 0, %v905
    %v907 = vrot.slane %v839, %v906
    %v908 = vlaneseq
    %v909 = vshrl.u32 %v908, 7
    %v910 = vsub.s32 0, %v909
    %v911 = vrot.slane %v847, %v910
    %v912 = vlaneseq
    %v913 = vshrl.u32 %v912, 7
    %v914 = vsub.s32 0, %v913
    %v915 = vrot.slane %v849, %v914
    %v916 = vlaneseq
    %v917 = vshrl.u32 %v916, 7
    %v918 = vsub.s32 0, %v917
    %v919 = vrot.slane %v832, %v918
    %v920 = vlaneseq
    %v921 = vshrl.u32 %v920, 7
    %v922 = vsub.s32 0, %v921
    %v923 = vrot.slane %v846, %v922
    %v924 = vlaneseq
    %v925 = vshrl.u32 %v924, 7
    %v926 = vsub.s32 0, %v925
    %v927 = vrot.slane %v848, %v926
    %v928 = vlaneseq
    %v929 = vshrl.u32 %v928, 7
    %v930 = vsub.s32 0, %v929
    %v931 = vrot.slane %v850, %v930
    %v932 = vlaneseq
    %v933 = vshrl.u32 %v932, 7
    %v934 = vsub.s32 0, %v933
    %v935 = vrot.slane %v874, %v934
    %v936 = vlaneseq
    %v937 = vshrl.u32 %v936, 7
    %v938 = vsub.s32 0, %v937
    %v939 = vrot.slane %v888, %v938
    %v940 = vlaneseq
    %v941 = vshrl.u32 %v940, 7
    %v942 = vsub.s32 0, %v941
    %v943 = vrot.slane %v896, %v942
    %v944 = vlaneseq
    %v945 = vshrl.u32 %v944, 7
    %v946 = vsub.s32 0, %v945
    %v947 = vrot.slane %v898, %v946
    %v948 = vlaneseq
    %v949 = vshrl.u32 %v948, 7
    %v950 = vsub.s32 0, %v949
    %v951 = vrot.slane %v881, %v950
    %v952 = vlaneseq
    %v953 = vshrl.u32 %v952, 7
    %v954 = vsub.s32 0, %v953
    %v955 = vrot.slane %v895, %v954
    %v956 = vlaneseq
    %v957 = vshrl.u32 %v956, 7
    %v958 = vsub.s32 0, %v957
    %v959 = vrot.slane %v897, %v958
    %v960 = vlaneseq
    %v961 = vshrl.u32 %v960, 7
    %v962 = vsub.s32 0, %v961
    %v963 = vrot.slane %v899, %v962
    %964 = vrot.lane.b32.xlu0 %v903, 96
    %v965 = vpop.permute.xlu0 %964
    %966 = vrot.lane.b32.xlu0 %v907, 96
    %v967 = vpop.permute.xlu0 %966
    %968 = vrot.lane.b32.xlu0 %v911, 96
    %v969 = vpop.permute.xlu0 %968
    %970 = vrot.lane.b32.xlu0 %v915, 96
    %v971 = vpop.permute.xlu0 %970
    %972 = vrot.lane.b32.xlu0 %v919, 96
    %v973 = vpop.permute.xlu0 %972
    %974 = vrot.lane.b32.xlu0 %v923, 96
    %v975 = vpop.permute.xlu0 %974
    %976 = vrot.lane.b32.xlu0 %v927, 96
    %v977 = vpop.permute.xlu0 %976
    %978 = vrot.lane.b32.xlu0 %v931, 96
    %v979 = vpop.permute.xlu0 %978
    %980 = vrot.lane.b32.xlu0 %v935, 96
    %v981 = vpop.permute.xlu0 %980
    %982 = vrot.lane.b32.xlu0 %v939, 96
    %v983 = vpop.permute.xlu0 %982
    %984 = vrot.lane.b32.xlu0 %v943, 96
    %v985 = vpop.permute.xlu0 %984
    %986 = vrot.lane.b32.xlu0 %v947, 96
    %v987 = vpop.permute.xlu0 %986
    %988 = vrot.lane.b32.xlu0 %v951, 96
    %v989 = vpop.permute.xlu0 %988
    %990 = vrot.lane.b32.xlu0 %v955, 96
    %v991 = vpop.permute.xlu0 %990
    %992 = vrot.lane.b32.xlu0 %v959, 96
    %v993 = vpop.permute.xlu0 %992
    %994 = vrot.lane.b32.xlu0 %v963, 96
    %v995 = vpop.permute.xlu0 %994
    %v1012 = vadd.f32 %v794, %v965
    %v1013 = vadd.f32 %v795, %v965
    %v1014 = vadd.f32 %v794, %v967
    %v1015 = vadd.f32 %v795, %v967
    %v1016 = vadd.f32 %v794, %v969
    %v1017 = vadd.f32 %v795, %v969
    %v1018 = vadd.f32 %v794, %v971
    %v1019 = vadd.f32 %v795, %v971
    %v1020 = vadd.f32 %v794, %v973
    %v1021 = vadd.f32 %v795, %v973
    %v1022 = vadd.f32 %v794, %v975
    %v1023 = vadd.f32 %v795, %v975
    %v1024 = vadd.f32 %v794, %v977
    %v1025 = vadd.f32 %v795, %v977
    %v1026 = vadd.f32 %v794, %v979
    %v1027 = vadd.f32 %v795, %v979
    %v1028 = vadd.f32 %v796, %v981
    %v1029 = vadd.f32 %v797, %v981
    %v1030 = vadd.f32 %v796, %v983
    %v1031 = vadd.f32 %v797, %v983
    %v1032 = vadd.f32 %v796, %v985
    %v1033 = vadd.f32 %v797, %v985
    %v1034 = vadd.f32 %v796, %v987
    %v1035 = vadd.f32 %v797, %v987
    %v1036 = vadd.f32 %v796, %v989
    %v1037 = vadd.f32 %v797, %v989
    %v1038 = vadd.f32 %v796, %v991
    %v1039 = vadd.f32 %v797, %v991
    %v1040 = vadd.f32 %v796, %v993
    %v1041 = vadd.f32 %v797, %v993
    %v1042 = vadd.f32 %v796, %v995
    %v1043 = vadd.f32 %v797, %v995
    %v1044 = vmax.f32 %v1012, 0.0
    %v1045 = vmax.f32 %v1013, 0.0
    %v1046 = vmax.f32 %v1014, 0.0
    %v1047 = vmax.f32 %v1015, 0.0
    %v1048 = vmax.f32 %v1016, 0.0
    %v1049 = vmax.f32 %v1017, 0.0
    %v1050 = vmax.f32 %v1018, 0.0
    %v1051 = vmax.f32 %v1019, 0.0
    %v1052 = vmax.f32 %v1020, 0.0
    %v1053 = vmax.f32 %v1021, 0.0
    %v1054 = vmax.f32 %v1022, 0.0
    %v1055 = vmax.f32 %v1023, 0.0
    %v1056 = vmax.f32 %v1024, 0.0
    %v1057 = vmax.f32 %v1025, 0.0
    %v1058 = vmax.f32 %v1026, 0.0
    %v1059 = vmax.f32 %v1027, 0.0
    %v1060 = vmax.f32 %v1028, 0.0
    %v1061 = vmax.f32 %v1029, 0.0
    %v1062 = vmax.f32 %v1030, 0.0
    %v1063 = vmax.f32 %v1031, 0.0
    %v1064 = vmax.f32 %v1032, 0.0
    %v1065 = vmax.f32 %v1033, 0.0
    %v1066 = vmax.f32 %v1034, 0.0
    %v1067 = vmax.f32 %v1035, 0.0
    %v1068 = vmax.f32 %v1036, 0.0
    %v1069 = vmax.f32 %v1037, 0.0
    %v1070 = vmax.f32 %v1038, 0.0
    %v1071 = vmax.f32 %v1039, 0.0
    %v1072 = vmax.f32 %v1040, 0.0
    %v1073 = vmax.f32 %v1041, 0.0
    %v1074 = vmax.f32 %v1042, 0.0
    %v1075 = vmax.f32 %v1043, 0.0
    %v1076 = vlaneseq
    %v1077 = vshrl.u32 %v1076, 7
    %v1078 = vsub.s32 1, %v1077
    %v1079 = vrot.slane %v64, %v1078
    %v1080 = vmul.f32 %v1044, %v1079
    %v1081 = vmul.f32 %v1045, %v1079
    %v1082 = vmul.f32 %v1046, %v1079
    %v1083 = vmul.f32 %v1047, %v1079
    %v1084 = vmul.f32 %v1048, %v1079
    %v1085 = vmul.f32 %v1049, %v1079
    %v1086 = vmul.f32 %v1050, %v1079
    %v1087 = vmul.f32 %v1051, %v1079
    %v1088 = vmul.f32 %v1052, %v1079
    %v1089 = vmul.f32 %v1053, %v1079
    %v1090 = vmul.f32 %v1054, %v1079
    %v1091 = vmul.f32 %v1055, %v1079
    %v1092 = vmul.f32 %v1056, %v1079
    %v1093 = vmul.f32 %v1057, %v1079
    %v1094 = vmul.f32 %v1058, %v1079
    %v1095 = vmul.f32 %v1059, %v1079
    %v1096 = vmul.f32 %v1060, %v1079
    %v1097 = vmul.f32 %v1061, %v1079
    %v1098 = vmul.f32 %v1062, %v1079
    %v1099 = vmul.f32 %v1063, %v1079
    %v1100 = vmul.f32 %v1064, %v1079
    %v1101 = vmul.f32 %v1065, %v1079
    %v1102 = vmul.f32 %v1066, %v1079
    %v1103 = vmul.f32 %v1067, %v1079
    %v1104 = vmul.f32 %v1068, %v1079
    %v1105 = vmul.f32 %v1069, %v1079
    %v1106 = vmul.f32 %v1070, %v1079
    %v1107 = vmul.f32 %v1071, %v1079
    %v1108 = vmul.f32 %v1072, %v1079
    %v1109 = vmul.f32 %v1073, %v1079
    %v1110 = vmul.f32 %v1074, %v1079
    %v1111 = vmul.f32 %v1075, %v1079
    %v1112 = vsel %vm71, %v1080, 0.0
    %1113 = vadd.xlane.f32.xlu0 %v1112
    %v1114 = vpop.xlane.xlu0 %1113
    %v1115 = vsel %vm71, %v1081, 0.0
    %1116 = vadd.xlane.f32.xlu0 %v1115
    %v1117 = vpop.xlane.xlu0 %1116
    %v1118 = vsel %vm71, %v1082, 0.0
    %1119 = vadd.xlane.f32.xlu0 %v1118
    %v1120 = vpop.xlane.xlu0 %1119
    %v1121 = vsel %vm71, %v1083, 0.0
    %1122 = vadd.xlane.f32.xlu0 %v1121
    %v1123 = vpop.xlane.xlu0 %1122
    %v1124 = vsel %vm71, %v1084, 0.0
    %1125 = vadd.xlane.f32.xlu0 %v1124
    %v1126 = vpop.xlane.xlu0 %1125
    %v1127 = vsel %vm71, %v1085, 0.0
    %1128 = vadd.xlane.f32.xlu0 %v1127
    %v1129 = vpop.xlane.xlu0 %1128
    %v1130 = vsel %vm71, %v1086, 0.0
    %1131 = vadd.xlane.f32.xlu0 %v1130
    %v1132 = vpop.xlane.xlu0 %1131
    %v1133 = vsel %vm71, %v1087, 0.0
    %1134 = vadd.xlane.f32.xlu0 %v1133
    %v1135 = vpop.xlane.xlu0 %1134
    %v1136 = vsel %vm71, %v1088, 0.0
    %1137 = vadd.xlane.f32.xlu0 %v1136
    %v1138 = vpop.xlane.xlu0 %1137
    %v1139 = vsel %vm71, %v1089, 0.0
    %1140 = vadd.xlane.f32.xlu0 %v1139
    %v1141 = vpop.xlane.xlu0 %1140
    %v1142 = vsel %vm71, %v1090, 0.0
    %1143 = vadd.xlane.f32.xlu0 %v1142
    %v1144 = vpop.xlane.xlu0 %1143
    %v1145 = vsel %vm71, %v1091, 0.0
    %1146 = vadd.xlane.f32.xlu0 %v1145
    %v1147 = vpop.xlane.xlu0 %1146
    %v1148 = vsel %vm71, %v1092, 0.0
    %1149 = vadd.xlane.f32.xlu0 %v1148
    %v1150 = vpop.xlane.xlu0 %1149
    %v1151 = vsel %vm71, %v1093, 0.0
    %1152 = vadd.xlane.f32.xlu0 %v1151
    %v1153 = vpop.xlane.xlu0 %1152
    %v1154 = vsel %vm71, %v1094, 0.0
    %1155 = vadd.xlane.f32.xlu0 %v1154
    %v1156 = vpop.xlane.xlu0 %1155
    %v1157 = vsel %vm71, %v1095, 0.0
    %1158 = vadd.xlane.f32.xlu0 %v1157
    %v1159 = vpop.xlane.xlu0 %1158
    %v1160 = vsel %vm71, %v1096, 0.0
    %1161 = vadd.xlane.f32.xlu0 %v1160
    %v1162 = vpop.xlane.xlu0 %1161
    %v1163 = vsel %vm71, %v1097, 0.0
    %1164 = vadd.xlane.f32.xlu0 %v1163
    %v1165 = vpop.xlane.xlu0 %1164
    %v1166 = vsel %vm71, %v1098, 0.0
    %1167 = vadd.xlane.f32.xlu0 %v1166
    %v1168 = vpop.xlane.xlu0 %1167
    %v1169 = vsel %vm71, %v1099, 0.0
    %1170 = vadd.xlane.f32.xlu0 %v1169
    %v1171 = vpop.xlane.xlu0 %1170
    %v1172 = vsel %vm71, %v1100, 0.0
    %1173 = vadd.xlane.f32.xlu0 %v1172
    %v1174 = vpop.xlane.xlu0 %1173
    %v1175 = vsel %vm71, %v1101, 0.0
    %1176 = vadd.xlane.f32.xlu0 %v1175
    %v1177 = vpop.xlane.xlu0 %1176
    %v1178 = vsel %vm71, %v1102, 0.0
    %1179 = vadd.xlane.f32.xlu0 %v1178
    %v1180 = vpop.xlane.xlu0 %1179
    %v1181 = vsel %vm71, %v1103, 0.0
    %1182 = vadd.xlane.f32.xlu0 %v1181
    %v1183 = vpop.xlane.xlu0 %1182
    %v1184 = vsel %vm71, %v1104, 0.0
    %1185 = vadd.xlane.f32.xlu0 %v1184
    %v1186 = vpop.xlane.xlu0 %1185
    %v1187 = vsel %vm71, %v1105, 0.0
    %1188 = vadd.xlane.f32.xlu0 %v1187
    %v1189 = vpop.xlane.xlu0 %1188
    %v1190 = vsel %vm71, %v1106, 0.0
    %1191 = vadd.xlane.f32.xlu0 %v1190
    %v1192 = vpop.xlane.xlu0 %1191
    %v1193 = vsel %vm71, %v1107, 0.0
    %1194 = vadd.xlane.f32.xlu0 %v1193
    %v1195 = vpop.xlane.xlu0 %1194
    %v1196 = vsel %vm71, %v1108, 0.0
    %1197 = vadd.xlane.f32.xlu0 %v1196
    %v1198 = vpop.xlane.xlu0 %1197
    %v1199 = vsel %vm71, %v1109, 0.0
    %1200 = vadd.xlane.f32.xlu0 %v1199
    %v1201 = vpop.xlane.xlu0 %1200
    %v1202 = vsel %vm71, %v1110, 0.0
    %1203 = vadd.xlane.f32.xlu0 %v1202
    %v1204 = vpop.xlane.xlu0 %1203
    %v1205 = vsel %vm71, %v1111, 0.0
    %1206 = vadd.xlane.f32.xlu0 %v1205
    %v1207 = vpop.xlane.xlu0 %1206
    %v1209 = vrot.slane %v64, 1
    %1210 = vrot.lane.b32.xlu0 %v1209, 96
    %v1211 = vpop.permute.xlu0 %1210
    %s1212 = vtos %v1211
    %v1213 = vstv %s1212
    %v1215 = vadd.f32 %v1114, %v1213
    %v1216 = vadd.f32 %v1117, %v1213
    %v1217 = vadd.f32 %v1120, %v1213
    %v1218 = vadd.f32 %v1123, %v1213
    %v1219 = vadd.f32 %v1126, %v1213
    %v1220 = vadd.f32 %v1129, %v1213
    %v1221 = vadd.f32 %v1132, %v1213
    %v1222 = vadd.f32 %v1135, %v1213
    %v1223 = vadd.f32 %v1138, %v1213
    %v1224 = vadd.f32 %v1141, %v1213
    %v1225 = vadd.f32 %v1144, %v1213
    %v1226 = vadd.f32 %v1147, %v1213
    %v1227 = vadd.f32 %v1150, %v1213
    %v1228 = vadd.f32 %v1153, %v1213
    %v1229 = vadd.f32 %v1156, %v1213
    %v1230 = vadd.f32 %v1159, %v1213
    %v1231 = vadd.f32 %v1162, %v1213
    %v1232 = vadd.f32 %v1165, %v1213
    %v1233 = vadd.f32 %v1168, %v1213
    %v1234 = vadd.f32 %v1171, %v1213
    %v1235 = vadd.f32 %v1174, %v1213
    %v1236 = vadd.f32 %v1177, %v1213
    %v1237 = vadd.f32 %v1180, %v1213
    %v1238 = vadd.f32 %v1183, %v1213
    %v1239 = vadd.f32 %v1186, %v1213
    %v1240 = vadd.f32 %v1189, %v1213
    %v1241 = vadd.f32 %v1192, %v1213
    %v1242 = vadd.f32 %v1195, %v1213
    %v1243 = vadd.f32 %v1198, %v1213
    %v1244 = vadd.f32 %v1201, %v1213
    %v1245 = vadd.f32 %v1204, %v1213
    %v1246 = vadd.f32 %v1207, %v1213
    %v1247 = vld [vmem:[%s2] sm:$0x3]
    %1249 = vrot.lane.b32.xlu0 %v1247, 16
    %v1250 = vpop.permute.xlu0 %1249
    %1252 = vrot.lane.b32.xlu0 %v1247, 32
    %v1253 = vpop.permute.xlu0 %1252
    %1255 = vrot.lane.b32.xlu0 %v1247, 48
    %v1256 = vpop.permute.xlu0 %1255
    %1258 = vrot.lane.b32.xlu0 %v1247, 64
    %v1259 = vpop.permute.xlu0 %1258
    %1261 = vrot.lane.b32.xlu0 %v1247, 80
    %v1262 = vpop.permute.xlu0 %1261
    %1264 = vrot.lane.b32.xlu0 %v1247, 96
    %v1265 = vpop.permute.xlu0 %1264
    %1267 = vrot.lane.b32.xlu0 %v1247, 112
    %v1268 = vpop.permute.xlu0 %1267
    %vm1270 = vcmask 130048
    %v1271 = vsel %vm1270, %v1247, %v1250
    %v1272 = vsel %vm71, %v1271, %v1253
    %vm1273 = vcmask 392192
    %v1274 = vsel %vm1273, %v1272, %v1256
    %vm1275 = vcmask 523264
    %v1276 = vsel %vm1275, %v1274, %v1259
    %vm1277 = vcmask 654336
    %v1278 = vsel %vm1277, %v1276, %v1262
    %vm1279 = vcmask 785408
    %v1280 = vsel %vm1279, %v1278, %v1265
    %vm1281 = vcmask 916480
    %v1282 = vsel %vm1281, %v1280, %v1268
    %v1284 = vlaneseq
    %v1285 = vshrl.u32 %v1284, 7
    %v1286 = vsub.s32 0, %v1285
    %v1287 = vrot.slane %v1282, %v1286
    %1289 = vbcast.lane.b32.xlu0 %v1287, 256
    %v1290 = vpop.permute.xlu0 %1289
    %s1292 = sor.u32 256, 8
    %1293 = vbcast.lane.b32.xlu0 %v1287, %s1292
    %v1294 = vpop.permute.xlu0 %1293
    %s1296 = sor.u32 256, 16
    %1297 = vbcast.lane.b32.xlu0 %v1287, %s1296
    %v1298 = vpop.permute.xlu0 %1297
    %s1300 = sor.u32 256, 24
    %1301 = vbcast.lane.b32.xlu0 %v1287, %s1300
    %v1302 = vpop.permute.xlu0 %1301
    %s1304 = sor.u32 256, 32
    %1305 = vbcast.lane.b32.xlu0 %v1287, %s1304
    %v1306 = vpop.permute.xlu0 %1305
    %s1308 = sor.u32 256, 40
    %1309 = vbcast.lane.b32.xlu0 %v1287, %s1308
    %v1310 = vpop.permute.xlu0 %1309
    %s1312 = sor.u32 256, 48
    %1313 = vbcast.lane.b32.xlu0 %v1287, %s1312
    %v1314 = vpop.permute.xlu0 %1313
    %s1316 = sor.u32 256, 56
    %1317 = vbcast.lane.b32.xlu0 %v1287, %s1316
    %v1318 = vpop.permute.xlu0 %1317
    %s1320 = sor.u32 256, 64
    %1321 = vbcast.lane.b32.xlu0 %v1287, %s1320
    %v1322 = vpop.permute.xlu0 %1321
    %s1324 = sor.u32 256, 72
    %1325 = vbcast.lane.b32.xlu0 %v1287, %s1324
    %v1326 = vpop.permute.xlu0 %1325
    %s1328 = sor.u32 256, 80
    %1329 = vbcast.lane.b32.xlu0 %v1287, %s1328
    %v1330 = vpop.permute.xlu0 %1329
    %s1332 = sor.u32 256, 88
    %1333 = vbcast.lane.b32.xlu0 %v1287, %s1332
    %v1334 = vpop.permute.xlu0 %1333
    %s1336 = sor.u32 256, 96
    %1337 = vbcast.lane.b32.xlu0 %v1287, %s1336
    %v1338 = vpop.permute.xlu0 %1337
    %s1340 = sor.u32 256, 104
    %1341 = vbcast.lane.b32.xlu0 %v1287, %s1340
    %v1342 = vpop.permute.xlu0 %1341
    %s1344 = sor.u32 256, 112
    %1345 = vbcast.lane.b32.xlu0 %v1287, %s1344
    %v1346 = vpop.permute.xlu0 %1345
    %s1348 = sor.u32 256, 120
    %1349 = vbcast.lane.b32.xlu0 %v1287, %s1348
    %v1350 = vpop.permute.xlu0 %1349
    %v1351 = vlaneseq
    %v1352 = vshrl.u32 %v1351, 7
    %v1353 = vsub.s32 1, %v1352
    %v1354 = vrot.slane %v1282, %v1353
    %1356 = vbcast.lane.b32.xlu0 %v1354, 256
    %v1357 = vpop.permute.xlu0 %1356
    %s1359 = sor.u32 256, 8
    %1360 = vbcast.lane.b32.xlu0 %v1354, %s1359
    %v1361 = vpop.permute.xlu0 %1360
    %s1363 = sor.u32 256, 16
    %1364 = vbcast.lane.b32.xlu0 %v1354, %s1363
    %v1365 = vpop.permute.xlu0 %1364
    %s1367 = sor.u32 256, 24
    %1368 = vbcast.lane.b32.xlu0 %v1354, %s1367
    %v1369 = vpop.permute.xlu0 %1368
    %s1371 = sor.u32 256, 32
    %1372 = vbcast.lane.b32.xlu0 %v1354, %s1371
    %v1373 = vpop.permute.xlu0 %1372
    %s1375 = sor.u32 256, 40
    %1376 = vbcast.lane.b32.xlu0 %v1354, %s1375
    %v1377 = vpop.permute.xlu0 %1376
    %s1379 = sor.u32 256, 48
    %1380 = vbcast.lane.b32.xlu0 %v1354, %s1379
    %v1381 = vpop.permute.xlu0 %1380
    %s1383 = sor.u32 256, 56
    %1384 = vbcast.lane.b32.xlu0 %v1354, %s1383
    %v1385 = vpop.permute.xlu0 %1384
    %s1387 = sor.u32 256, 64
    %1388 = vbcast.lane.b32.xlu0 %v1354, %s1387
    %v1389 = vpop.permute.xlu0 %1388
    %s1391 = sor.u32 256, 72
    %1392 = vbcast.lane.b32.xlu0 %v1354, %s1391
    %v1393 = vpop.permute.xlu0 %1392
    %s1395 = sor.u32 256, 80
    %1396 = vbcast.lane.b32.xlu0 %v1354, %s1395
    %v1397 = vpop.permute.xlu0 %1396
    %s1399 = sor.u32 256, 88
    %1400 = vbcast.lane.b32.xlu0 %v1354, %s1399
    %v1401 = vpop.permute.xlu0 %1400
    %s1403 = sor.u32 256, 96
    %1404 = vbcast.lane.b32.xlu0 %v1354, %s1403
    %v1405 = vpop.permute.xlu0 %1404
    %s1407 = sor.u32 256, 104
    %1408 = vbcast.lane.b32.xlu0 %v1354, %s1407
    %v1409 = vpop.permute.xlu0 %1408
    %s1411 = sor.u32 256, 112
    %1412 = vbcast.lane.b32.xlu0 %v1354, %s1411
    %v1413 = vpop.permute.xlu0 %1412
    %s1415 = sor.u32 256, 120
    %1416 = vbcast.lane.b32.xlu0 %v1354, %s1415
    %v1417 = vpop.permute.xlu0 %1416
    %v1450 = vmul.f32 %v1215, %v1290
    %v1451 = vmul.f32 %v1216, %v1294
    %v1452 = vmul.f32 %v1217, %v1298
    %v1453 = vmul.f32 %v1218, %v1302
    %v1454 = vmul.f32 %v1219, %v1306
    %v1455 = vmul.f32 %v1220, %v1310
    %v1456 = vmul.f32 %v1221, %v1314
    %v1457 = vmul.f32 %v1222, %v1318
    %v1458 = vmul.f32 %v1223, %v1322
    %v1459 = vmul.f32 %v1224, %v1326
    %v1460 = vmul.f32 %v1225, %v1330
    %v1461 = vmul.f32 %v1226, %v1334
    %v1462 = vmul.f32 %v1227, %v1338
    %v1463 = vmul.f32 %v1228, %v1342
    %v1464 = vmul.f32 %v1229, %v1346
    %v1465 = vmul.f32 %v1230, %v1350
    %v1466 = vmul.f32 %v1231, %v1357
    %v1467 = vmul.f32 %v1232, %v1361
    %v1468 = vmul.f32 %v1233, %v1365
    %v1469 = vmul.f32 %v1234, %v1369
    %v1470 = vmul.f32 %v1235, %v1373
    %v1471 = vmul.f32 %v1236, %v1377
    %v1472 = vmul.f32 %v1237, %v1381
    %v1473 = vmul.f32 %v1238, %v1385
    %v1474 = vmul.f32 %v1239, %v1389
    %v1475 = vmul.f32 %v1240, %v1393
    %v1476 = vmul.f32 %v1241, %v1397
    %v1477 = vmul.f32 %v1242, %v1401
    %v1478 = vmul.f32 %v1243, %v1405
    %v1479 = vmul.f32 %v1244, %v1409
    %v1480 = vmul.f32 %v1245, %v1413
    %v1481 = vmul.f32 %v1246, %v1417
    %1514 = vset.pattern.permute.xlu0 0
    %1515 = vperm.xlu0 %1514, %v1450
    %v1516 = vpop.permute.xlu0 %1515
    %1517 = vset.pattern.permute.xlu0 0
    %1518 = vperm.xlu0 %1517, %v1451
    %v1519 = vpop.permute.xlu0 %1518
    %1520 = vset.pattern.permute.xlu0 0
    %1521 = vperm.xlu0 %1520, %v1452
    %v1522 = vpop.permute.xlu0 %1521
    %1523 = vset.pattern.permute.xlu0 0
    %1524 = vperm.xlu0 %1523, %v1453
    %v1525 = vpop.permute.xlu0 %1524
    %1526 = vset.pattern.permute.xlu0 0
    %1527 = vperm.xlu0 %1526, %v1454
    %v1528 = vpop.permute.xlu0 %1527
    %1529 = vset.pattern.permute.xlu0 0
    %1530 = vperm.xlu0 %1529, %v1455
    %v1531 = vpop.permute.xlu0 %1530
    %1532 = vset.pattern.permute.xlu0 0
    %1533 = vperm.xlu0 %1532, %v1456
    %v1534 = vpop.permute.xlu0 %1533
    %1535 = vset.pattern.permute.xlu0 0
    %1536 = vperm.xlu0 %1535, %v1457
    %v1537 = vpop.permute.xlu0 %1536
    %1538 = vset.pattern.permute.xlu0 0
    %1539 = vperm.xlu0 %1538, %v1458
    %v1540 = vpop.permute.xlu0 %1539
    %1541 = vset.pattern.permute.xlu0 0
    %1542 = vperm.xlu0 %1541, %v1459
    %v1543 = vpop.permute.xlu0 %1542
    %1544 = vset.pattern.permute.xlu0 0
    %1545 = vperm.xlu0 %1544, %v1460
    %v1546 = vpop.permute.xlu0 %1545
    %1547 = vset.pattern.permute.xlu0 0
    %1548 = vperm.xlu0 %1547, %v1461
    %v1549 = vpop.permute.xlu0 %1548
    %1550 = vset.pattern.permute.xlu0 0
    %1551 = vperm.xlu0 %1550, %v1462
    %v1552 = vpop.permute.xlu0 %1551
    %1553 = vset.pattern.permute.xlu0 0
    %1554 = vperm.xlu0 %1553, %v1463
    %v1555 = vpop.permute.xlu0 %1554
    %1556 = vset.pattern.permute.xlu0 0
    %1557 = vperm.xlu0 %1556, %v1464
    %v1558 = vpop.permute.xlu0 %1557
    %1559 = vset.pattern.permute.xlu0 0
    %1560 = vperm.xlu0 %1559, %v1465
    %v1561 = vpop.permute.xlu0 %1560
    %1562 = vset.pattern.permute.xlu0 0
    %1563 = vperm.xlu0 %1562, %v1466
    %v1564 = vpop.permute.xlu0 %1563
    %1565 = vset.pattern.permute.xlu0 0
    %1566 = vperm.xlu0 %1565, %v1467
    %v1567 = vpop.permute.xlu0 %1566
    %1568 = vset.pattern.permute.xlu0 0
    %1569 = vperm.xlu0 %1568, %v1468
    %v1570 = vpop.permute.xlu0 %1569
    %1571 = vset.pattern.permute.xlu0 0
    %1572 = vperm.xlu0 %1571, %v1469
    %v1573 = vpop.permute.xlu0 %1572
    %1574 = vset.pattern.permute.xlu0 0
    %1575 = vperm.xlu0 %1574, %v1470
    %v1576 = vpop.permute.xlu0 %1575
    %1577 = vset.pattern.permute.xlu0 0
    %1578 = vperm.xlu0 %1577, %v1471
    %v1579 = vpop.permute.xlu0 %1578
    %1580 = vset.pattern.permute.xlu0 0
    %1581 = vperm.xlu0 %1580, %v1472
    %v1582 = vpop.permute.xlu0 %1581
    %1583 = vset.pattern.permute.xlu0 0
    %1584 = vperm.xlu0 %1583, %v1473
    %v1585 = vpop.permute.xlu0 %1584
    %1586 = vset.pattern.permute.xlu0 0
    %1587 = vperm.xlu0 %1586, %v1474
    %v1588 = vpop.permute.xlu0 %1587
    %1589 = vset.pattern.permute.xlu0 0
    %1590 = vperm.xlu0 %1589, %v1475
    %v1591 = vpop.permute.xlu0 %1590
    %1592 = vset.pattern.permute.xlu0 0
    %1593 = vperm.xlu0 %1592, %v1476
    %v1594 = vpop.permute.xlu0 %1593
    %1595 = vset.pattern.permute.xlu0 0
    %1596 = vperm.xlu0 %1595, %v1477
    %v1597 = vpop.permute.xlu0 %1596
    %1598 = vset.pattern.permute.xlu0 0
    %1599 = vperm.xlu0 %1598, %v1478
    %v1600 = vpop.permute.xlu0 %1599
    %1601 = vset.pattern.permute.xlu0 0
    %1602 = vperm.xlu0 %1601, %v1479
    %v1603 = vpop.permute.xlu0 %1602
    %1604 = vset.pattern.permute.xlu0 0
    %1605 = vperm.xlu0 %1604, %v1480
    %v1606 = vpop.permute.xlu0 %1605
    %1607 = vset.pattern.permute.xlu0 0
    %1608 = vperm.xlu0 %1607, %v1481
    %v1609 = vpop.permute.xlu0 %1608
    %v1610 = vlaneseq
    %v1611 = vand.u32 %v1610, 127
    %v1612 = vlaneseq
    %v1613 = vshrl.u32 %v1612, 7
    %v1614 = vsub.s32 %v1611, %v1613
    %v1615 = vrot.slane %v1516, %v1614
    %v1616 = vadd.s32 %v1611, 4294967288
    %v1617 = vlaneseq
    %v1618 = vshrl.u32 %v1617, 7
    %v1619 = vsub.s32 %v1616, %v1618
    %v1620 = vrot.slane %v1519, %v1619
    %vm1621 = vcmask 130112
    %v1622 = vsel %vm1621, %v1620, %v1615
    %v1623 = vadd.s32 %v1611, 4294967280
    %v1624 = vlaneseq
    %v1625 = vshrl.u32 %v1624, 7
    %v1626 = vsub.s32 %v1623, %v1625
    %v1627 = vrot.slane %v1522, %v1626
    %vm1628 = vcmask 195712
    %v1629 = vsel %vm1628, %v1627, %v1622
    %v1630 = vadd.s32 %v1611, 4294967272
    %v1631 = vlaneseq
    %v1632 = vshrl.u32 %v1631, 7
    %v1633 = vsub.s32 %v1630, %v1632
    %v1634 = vrot.slane %v1525, %v1633
    %vm1635 = vcmask 261312
    %v1636 = vsel %vm1635, %v1634, %v1629
    %v1637 = vadd.s32 %v1611, 4294967264
    %v1638 = vlaneseq
    %v1639 = vshrl.u32 %v1638, 7
    %v1640 = vsub.s32 %v1637, %v1639
    %v1641 = vrot.slane %v1528, %v1640
    %vm1642 = vcmask 326912
    %v1643 = vsel %vm1642, %v1641, %v1636
    %v1644 = vadd.s32 %v1611, 4294967256
    %v1645 = vlaneseq
    %v1646 = vshrl.u32 %v1645, 7
    %v1647 = vsub.s32 %v1644, %v1646
    %v1648 = vrot.slane %v1531, %v1647
    %vm1649 = vcmask 392512
    %v1650 = vsel %vm1649, %v1648, %v1643
    %v1651 = vadd.s32 %v1611, 4294967248
    %v1652 = vlaneseq
    %v1653 = vshrl.u32 %v1652, 7
    %v1654 = vsub.s32 %v1651, %v1653
    %v1655 = vrot.slane %v1534, %v1654
    %vm1656 = vcmask 458112
    %v1657 = vsel %vm1656, %v1655, %v1650
    %v1658 = vadd.s32 %v1611, 4294967240
    %v1659 = vlaneseq
    %v1660 = vshrl.u32 %v1659, 7
    %v1661 = vsub.s32 %v1658, %v1660
    %v1662 = vrot.slane %v1537, %v1661
    %vm1663 = vcmask 523712
    %v1664 = vsel %vm1663, %v1662, %v1657
    %v1665 = vadd.s32 %v1611, 4294967232
    %v1666 = vlaneseq
    %v1667 = vshrl.u32 %v1666, 7
    %v1668 = vsub.s32 %v1665, %v1667
    %v1669 = vrot.slane %v1540, %v1668
    %vm1670 = vcmask 589312
    %v1671 = vsel %vm1670, %v1669, %v1664
    %v1672 = vadd.s32 %v1611, 4294967224
    %v1673 = vlaneseq
    %v1674 = vshrl.u32 %v1673, 7
    %v1675 = vsub.s32 %v1672, %v1674
    %v1676 = vrot.slane %v1543, %v1675
    %vm1677 = vcmask 654912
    %v1678 = vsel %vm1677, %v1676, %v1671
    %v1679 = vadd.s32 %v1611, 4294967216
    %v1680 = vlaneseq
    %v1681 = vshrl.u32 %v1680, 7
    %v1682 = vsub.s32 %v1679, %v1681
    %v1683 = vrot.slane %v1546, %v1682
    %vm1684 = vcmask 720512
    %v1685 = vsel %vm1684, %v1683, %v1678
    %v1686 = vadd.s32 %v1611, 4294967208
    %v1687 = vlaneseq
    %v1688 = vshrl.u32 %v1687, 7
    %v1689 = vsub.s32 %v1686, %v1688
    %v1690 = vrot.slane %v1549, %v1689
    %vm1691 = vcmask 786112
    %v1692 = vsel %vm1691, %v1690, %v1685
    %v1693 = vadd.s32 %v1611, 4294967200
    %v1694 = vlaneseq
    %v1695 = vshrl.u32 %v1694, 7
    %v1696 = vsub.s32 %v1693, %v1695
    %v1697 = vrot.slane %v1552, %v1696
    %vm1698 = vcmask 851712
    %v1699 = vsel %vm1698, %v1697, %v1692
    %v1700 = vadd.s32 %v1611, 4294967192
    %v1701 = vlaneseq
    %v1702 = vshrl.u32 %v1701, 7
    %v1703 = vsub.s32 %v1700, %v1702
    %v1704 = vrot.slane %v1555, %v1703
    %vm1705 = vcmask 917312
    %v1706 = vsel %vm1705, %v1704, %v1699
    %v1707 = vadd.s32 %v1611, 4294967184
    %v1708 = vlaneseq
    %v1709 = vshrl.u32 %v1708, 7
    %v1710 = vsub.s32 %v1707, %v1709
    %v1711 = vrot.slane %v1558, %v1710
    %vm1712 = vcmask 982912
    %v1713 = vsel %vm1712, %v1711, %v1706
    %v1714 = vadd.s32 %v1611, 4294967176
    %v1715 = vlaneseq
    %v1716 = vshrl.u32 %v1715, 7
    %v1717 = vsub.s32 %v1714, %v1716
    %v1718 = vrot.slane %v1561, %v1717
    %vm1719 = vcmask 1048512
    %v1720 = vsel %vm1719, %v1718, %v1713
    %v1721 = vlaneseq
    %v1722 = vshrl.u32 %v1721, 7
    %v1723 = vsub.s32 %v1611, %v1722
    %v1724 = vrot.slane %v1564, %v1723
    %v1725 = vlaneseq
    %v1726 = vshrl.u32 %v1725, 7
    %v1727 = vsub.s32 %v1616, %v1726
    %v1728 = vrot.slane %v1567, %v1727
    %v1729 = vsel %vm1621, %v1728, %v1724
    %v1730 = vlaneseq
    %v1731 = vshrl.u32 %v1730, 7
    %v1732 = vsub.s32 %v1623, %v1731
    %v1733 = vrot.slane %v1570, %v1732
    %v1734 = vsel %vm1628, %v1733, %v1729
    %v1735 = vlaneseq
    %v1736 = vshrl.u32 %v1735, 7
    %v1737 = vsub.s32 %v1630, %v1736
    %v1738 = vrot.slane %v1573, %v1737
    %v1739 = vsel %vm1635, %v1738, %v1734
    %v1740 = vlaneseq
    %v1741 = vshrl.u32 %v1740, 7
    %v1742 = vsub.s32 %v1637, %v1741
    %v1743 = vrot.slane %v1576, %v1742
    %v1744 = vsel %vm1642, %v1743, %v1739
    %v1745 = vlaneseq
    %v1746 = vshrl.u32 %v1745, 7
    %v1747 = vsub.s32 %v1644, %v1746
    %v1748 = vrot.slane %v1579, %v1747
    %v1749 = vsel %vm1649, %v1748, %v1744
    %v1750 = vlaneseq
    %v1751 = vshrl.u32 %v1750, 7
    %v1752 = vsub.s32 %v1651, %v1751
    %v1753 = vrot.slane %v1582, %v1752
    %v1754 = vsel %vm1656, %v1753, %v1749
    %v1755 = vlaneseq
    %v1756 = vshrl.u32 %v1755, 7
    %v1757 = vsub.s32 %v1658, %v1756
    %v1758 = vrot.slane %v1585, %v1757
    %v1759 = vsel %vm1663, %v1758, %v1754
    %v1760 = vlaneseq
    %v1761 = vshrl.u32 %v1760, 7
    %v1762 = vsub.s32 %v1665, %v1761
    %v1763 = vrot.slane %v1588, %v1762
    %v1764 = vsel %vm1670, %v1763, %v1759
    %v1765 = vlaneseq
    %v1766 = vshrl.u32 %v1765, 7
    %v1767 = vsub.s32 %v1672, %v1766
    %v1768 = vrot.slane %v1591, %v1767
    %v1769 = vsel %vm1677, %v1768, %v1764
    %v1770 = vlaneseq
    %v1771 = vshrl.u32 %v1770, 7
    %v1772 = vsub.s32 %v1679, %v1771
    %v1773 = vrot.slane %v1594, %v1772
    %v1774 = vsel %vm1684, %v1773, %v1769
    %v1775 = vlaneseq
    %v1776 = vshrl.u32 %v1775, 7
    %v1777 = vsub.s32 %v1686, %v1776
    %v1778 = vrot.slane %v1597, %v1777
    %v1779 = vsel %vm1691, %v1778, %v1774
    %v1780 = vlaneseq
    %v1781 = vshrl.u32 %v1780, 7
    %v1782 = vsub.s32 %v1693, %v1781
    %v1783 = vrot.slane %v1600, %v1782
    %v1784 = vsel %vm1698, %v1783, %v1779
    %v1785 = vlaneseq
    %v1786 = vshrl.u32 %v1785, 7
    %v1787 = vsub.s32 %v1700, %v1786
    %v1788 = vrot.slane %v1603, %v1787
    %v1789 = vsel %vm1705, %v1788, %v1784
    %v1790 = vlaneseq
    %v1791 = vshrl.u32 %v1790, 7
    %v1792 = vsub.s32 %v1707, %v1791
    %v1793 = vrot.slane %v1606, %v1792
    %v1794 = vsel %vm1712, %v1793, %v1789
    %v1795 = vlaneseq
    %v1796 = vshrl.u32 %v1795, 7
    %v1797 = vsub.s32 %v1714, %v1796
    %v1798 = vrot.slane %v1609, %v1797
    %v1799 = vsel %vm1719, %v1798, %v1794
    %vm1800 = vcmask 1041409
    %v1801 = vsel %vm1800, %v1799, %v1720
    %1803 = vst [vmem:[%s4] sm:$0x3] %v1801
    %v1804 = vlaneseq
    %v1805 = vshrl.u32 %v1804, 7
    %v1806 = vsub.s32 2, %v1805
    %v1807 = vrot.slane %v64, %v1806
    %v1808 = vmul.f32 %v1807, %v1282
    %1809 = vst [vmem:[%s5] sm:$0x3] %v1808
    // Predicated region
    $region30: #{actor_forward.1} parent=1 // pred_check
      _
    $region31: #{actor_forward.1} parent=1 // pred_check_branch
      %1811 = sbr.rel (0) target = $region33
    $region32: #{actor_forward.1} parent=1 // pred_region
      _
    $region33: #{actor_forward.1} parent=1 // pred_fallthru
      _
    // Predicated region
    $region34: #{actor_forward.1} parent=1 // pred_check
      _
    $region35: #{actor_forward.1} parent=1 // pred_check_branch
      %1813 = sbr.rel (0) target = $region37
    $region36: #{actor_forward.1} parent=1 // pred_region
      _
    $region37: #{actor_forward.1} parent=1 // pred_fallthru
      _
    // Predicated region
    $region38: #{actor_forward.1} parent=1 // pred_check
      _
    $region39: #{actor_forward.1} parent=1 // pred_check_branch
      %1815 = sbr.rel (0) target = $region41
    $region40: #{actor_forward.1} parent=1 // pred_region
      _
    $region41: #{actor_forward.1} parent=1 // pred_fallthru
      _
    // Predicated region
    $region42: #{actor_forward.1} parent=1 // pred_check
      _
    $region43: #{actor_forward.1} parent=1 // pred_check_branch
      %1817 = sbr.rel (0) target = $region45
    $region44: #{actor_forward.1} parent=1 // pred_region
      _
    $region45: #{actor_forward.1} parent=1 // pred_fallthru
      _
    %1818 = vsyncpa [#allocation3], 1
    %1819 = vsyncpa [#allocation5], 1

</llo_original>
